<compile_context>
chip_gen: v5e
topology: v5e:2x2
jax: 0.10.0
libtpu: 0.0.40
codegen_flags: <defaults>
</compile_context>

<pallas_src>
import numpy as np
import jax
import jax.numpy as jnp
from jax.experimental import pallas as pl
from jax.experimental.pallas import tpu as pltpu

# ----------------------------- sizes (TPU-tile friendly) ----------------------
B = 256               # batch (images and texts) -> 2x2 grid of 128x128 tiles
C, H, W = 4, 16, 16   # image NCHW
IMG_FLAT = C * H * W  # 1024 (flattened image -> stand-in encoder linear input)
IMG_MLP = 128         # image_mlp_dim
TXT_MLP = 128         # text_mlp_dim (embedding dim of the stand-in text encoder)
PROJ = 128            # proj_dim
VOCAB = 64
SEQ = 16
TM = 128              # image-batch tile (rows of the logits)
TN = 128              # text-batch tile  (cols of the logits)
INIT_TAU = float(np.log(1.0))
INIT_B = 0.0
EPS = 1e-12           # F.normalize default eps


# ----------------------------- Pallas kernel ----------------------------------
def clip_kernel(scal_ref,            # SMEM  (2,)  [exp(t_prime), b]
                img_ref,             # VMEM  (TM, IMG_FLAT)  bf16 flattened image tile
                txt_ref,             # VMEM  (TN, TXT_MLP)   bf16 pooled text tile
                w_enc_ref,           # VMEM  (IMG_FLAT, IMG_MLP) bf16 (resident)
                wi1_ref,             # VMEM  (IMG_MLP, IMG_MLP)  bf16 (resident)
                wi2_ref,             # VMEM  (IMG_MLP, PROJ)     bf16 (resident)
                wt1_ref,             # VMEM  (TXT_MLP, TXT_MLP)  bf16 (resident)
                wt2_ref,             # VMEM  (TXT_MLP, PROJ)     bf16 (resident)
                out_ref,             # VMEM  (TM, TN) f32 logits tile
                img_feat_sc):        # VMEM  (TM, PROJ) bf16 normalized img features
    j = pl.program_id(1)
    scale = scal_ref[0]
    bias = scal_ref[1]

    # ----- image path: computed once per image tile (j == 0), cached in VMEM --
    @pl.when(j == 0)
    def _():
        # synthetic image encoder: flattened NCHW -> image_mlp_dim features
        feat = jnp.dot(img_ref[...], w_enc_ref[...],
                       preferred_element_type=jnp.float32)
        # image_projection: Linear(no bias) -> ReLU -> Linear(no bias)
        ih = jnp.maximum(
            jnp.dot(feat.astype(jnp.bfloat16), wi1_ref[...],
                    preferred_element_type=jnp.float32), 0.0)
        ip = jnp.dot(ih.astype(jnp.bfloat16), wi2_ref[...],
                     preferred_element_type=jnp.float32)
        # F.normalize(p=2, dim=-1): x * rsqrt(max(sumsq, eps^2)) == x / max(||x||, eps)
        inv = jax.lax.rsqrt(
            jnp.maximum(jnp.sum(ip * ip, axis=-1, keepdims=True), EPS * EPS))
        img_feat_sc[...] = (ip * inv).astype(jnp.bfloat16)

    # ----- text path: per text tile ------------------------------------------
    th = jnp.maximum(
        jnp.dot(txt_ref[...], wt1_ref[...],
                preferred_element_type=jnp.float32), 0.0)
    tp = jnp.dot(th.astype(jnp.bfloat16), wt2_ref[...],
                 preferred_element_type=jnp.float32)
    tinv = jax.lax.rsqrt(
        jnp.maximum(jnp.sum(tp * tp, axis=-1, keepdims=True), EPS * EPS))
    tpn = (tp * tinv).astype(jnp.bfloat16)

    # ----- logits tile = img_n @ txt_n.T * exp(t_prime) + b -------------------
    # dot_general contracting last axes of both -> no explicit transpose.
    logits = jax.lax.dot_general(
        img_feat_sc[...], tpn,
        dimension_numbers=(((1,), (1,)), ((), ())),
        preferred_element_type=jnp.float32)
    out_ref[...] = logits * scale + bias


def clip_forward_pallas(t_prime, b, img_flat, txt_feat,
                        w_enc, wi1, wi2, wt1, wt2):
    """Fused CLIP forward (projections + normalize + similarity + temp/bias)."""
    # bf16 MXU inputs (halves HBM traffic, native MXU path); f32 accumulation.
    img_bf = img_flat.astype(jnp.bfloat16)
    txt_bf = txt_feat.astype(jnp.bfloat16)
    w_enc_bf = w_enc.astype(jnp.bfloat16)
    wi1_bf = wi1.astype(jnp.bfloat16)
    wi2_bf = wi2.astype(jnp.bfloat16)
    wt1_bf = wt1.astype(jnp.bfloat16)
    wt2_bf = wt2.astype(jnp.bfloat16)
    # Precompute exp(t_prime) outside the kernel; scalars ride in SMEM.
    scal = jnp.stack([jnp.exp(t_prime), b]).astype(jnp.float32)

    num_i = B // TM
    num_j = B // TN
    wspec = lambda shape: pl.BlockSpec(shape, lambda i, j: (0, 0))  # resident

    return pl.pallas_call(
        clip_kernel,
        out_shape=jax.ShapeDtypeStruct((B, B), jnp.float32),
        grid=(num_i, num_j),
        in_specs=[
            pl.BlockSpec(memory_space=pltpu.MemorySpace.SMEM),       # [scale, b]
            pl.BlockSpec((TM, IMG_FLAT), lambda i, j: (i, 0)),       # image tile
            pl.BlockSpec((TN, TXT_MLP), lambda i, j: (j, 0)),        # text tile
            wspec((IMG_FLAT, IMG_MLP)),
            wspec((IMG_MLP, IMG_MLP)),
            wspec((IMG_MLP, PROJ)),
            wspec((TXT_MLP, TXT_MLP)),
            wspec((TXT_MLP, PROJ)),
        ],
        out_specs=pl.BlockSpec((TM, TN), lambda i, j: (i, j)),
        scratch_shapes=[pltpu.VMEM((TM, PROJ), jnp.bfloat16)],
        compiler_params=pltpu.CompilerParams(
            # i (image tiles) independent -> parallel (v7x 2-TC split);
            # j must be sequential: img_feat scratch is filled at j == 0.
            dimension_semantics=("parallel", "arbitrary")),
    )(scal, img_bf, txt_bf, w_enc_bf, wi1_bf, wi2_bf, wt1_bf, wt2_bf)


# ----------------------------- glue (plain JAX) --------------------------------
def text_encoder(input_ids, attention_mask, emb_table):
    """Stand-in text encoder: embedding lookup + attention-mask mean pooling."""
    # TODO(synk): the reference CLIP takes an arbitrary text_encoder module
    # (e.g. a transformer); a synthetic embedding + mean-pool stand-in is used
    # here, with the data-dependent gather left in plain JAX glue.
    emb = emb_table[input_ids]                                   # (B, SEQ, TXT_MLP)
    mask = attention_mask.astype(jnp.float32)[..., None]         # (B, SEQ, 1)
    summed = jnp.sum(emb * mask, axis=1)                         # (B, TXT_MLP)
    denom = jnp.maximum(jnp.sum(mask, axis=1), 1.0)              # (B, 1)
    return summed / denom


def reference_forward(t_prime, b, img_flat, txt_feat, w_enc, wi1, wi2, wt1, wt2):
    """Pure-JAX f32 reference replicating the PyTorch semantics."""
    img_feat = img_flat @ w_enc
    ip = jnp.maximum(img_feat @ wi1, 0.0) @ wi2
    tp = jnp.maximum(txt_feat @ wt1, 0.0) @ wt2
    ipn = ip / jnp.maximum(jnp.linalg.norm(ip, axis=-1, keepdims=True), EPS)
    tpn = tp / jnp.maximum(jnp.linalg.norm(tp, axis=-1, keepdims=True), EPS)
    return ipn @ tpn.T * jnp.exp(t_prime) + b


if __name__ == "__main__":
    key = jax.random.PRNGKey(0)
    keys = jax.random.split(key, 10)

    # ----- deterministic parameter init (shapes from CLIP.__init__) -----------
    # Weights stored as [in, out] so that y = x @ W (== PyTorch x @ W_pt.T).
    w_enc = jax.random.normal(keys[0], (IMG_FLAT, IMG_MLP), jnp.float32) * 0.02
    wi1 = jax.random.normal(keys[1], (IMG_MLP, IMG_MLP), jnp.float32) * 0.05
    wi2 = jax.random.normal(keys[2], (IMG_MLP, PROJ), jnp.float32) * 0.05
    wt1 = jax.random.normal(keys[3], (TXT_MLP, TXT_MLP), jnp.float32) * 0.05
    wt2 = jax.random.normal(keys[4], (TXT_MLP, PROJ), jnp.float32) * 0.05
    emb_table = jax.random.normal(keys[5], (VOCAB, TXT_MLP), jnp.float32) * 0.1
    t_prime = jnp.float32(INIT_TAU)
    b = jnp.float32(INIT_B)

    # ----- deterministic example inputs ----------------------------------------
    image = jax.random.normal(keys[6], (B, C, H, W), jnp.float32)      # NCHW
    input_ids = jax.random.randint(keys[7], (B, SEQ), 0, VOCAB)
    attention_mask = (jax.random.uniform(keys[8], (B, SEQ)) > 0.3).astype(jnp.int32)
    attention_mask = attention_mask.at[:, 0].set(1)  # at least one valid token

    # ----- glue: flatten image (NCHW row-major) & run stand-in text encoder ----
    img_flat = image.reshape(B, IMG_FLAT)
    txt_feat = text_encoder(input_ids, attention_mask, emb_table)

    # ----- fused Pallas CLIP forward --------------------------------------------
    logits = clip_forward_pallas(t_prime, b, img_flat, txt_feat,
                                 w_enc, wi1, wi2, wt1, wt2)
    logits = jax.block_until_ready(logits)

    ref = reference_forward(t_prime, b, img_flat, txt_feat,
                            w_enc, wi1, wi2, wt1, wt2)
    # bf16 MXU inputs with f32 accumulation -> loosened tolerance vs f32 ref.
    np.testing.assert_allclose(np.asarray(logits), np.asarray(ref),
                               rtol=2e-2, atol=2e-2)
    print("KERNEL_OK")
</pallas_src>

<mosaic_0001>
module attributes {stable_mosaic.version = 11 : i64} {
  func.func @clip_kernel(%arg0: i32, %arg1: i32, %arg2: memref<2xf32, #tpu.memory_space<smem>>, %arg3: memref<128x1024xbf16, #tpu.memory_space<vmem>>, %arg4: memref<128x128xbf16, #tpu.memory_space<vmem>>, %arg5: memref<1024x128xbf16, #tpu.memory_space<vmem>>, %arg6: memref<128x128xbf16, #tpu.memory_space<vmem>>, %arg7: memref<128x128xbf16, #tpu.memory_space<vmem>>, %arg8: memref<128x128xbf16, #tpu.memory_space<vmem>>, %arg9: memref<128x128xbf16, #tpu.memory_space<vmem>>, %arg10: memref<128x128xf32, #tpu.memory_space<vmem>>, %arg11: memref<128x128xbf16, #tpu.memory_space<vmem>>) attributes {dimension_semantics = [#tpu.dimension_semantics<parallel>, #tpu.dimension_semantics<arbitrary>], iteration_bounds = array<i64: 2, 2>, scalar_prefetch = 0 : i64, scratch_operands = 1 : i64, tpu.core_type = #tpu.core_type<tc>, window_params = [{transform_indices = @transform_0, window_bounds = array<i64: 2>}, {transform_indices = @transform_1, window_bounds = array<i64: 128, 1024>}, {transform_indices = @transform_2, window_bounds = array<i64: 128, 128>}, {pipeline_mode = #tpu.pipeline_mode<synchronous>, transform_indices = @transform_3, window_bounds = array<i64: 1024, 128>}, {pipeline_mode = #tpu.pipeline_mode<synchronous>, transform_indices = @transform_4, window_bounds = array<i64: 128, 128>}, {pipeline_mode = #tpu.pipeline_mode<synchronous>, transform_indices = @transform_5, window_bounds = array<i64: 128, 128>}, {pipeline_mode = #tpu.pipeline_mode<synchronous>, transform_indices = @transform_6, window_bounds = array<i64: 128, 128>}, {pipeline_mode = #tpu.pipeline_mode<synchronous>, transform_indices = @transform_7, window_bounds = array<i64: 128, 128>}, {transform_indices = @transform_8, window_bounds = array<i64: 128, 128>}]} {
    %c0 = arith.constant 0 : index
    %0 = memref.load %arg2[%c0] : memref<2xf32, #tpu.memory_space<smem>>
    %c1 = arith.constant 1 : index
    %1 = memref.load %arg2[%c1] : memref<2xf32, #tpu.memory_space<smem>>
    %c0_i32 = arith.constant 0 : i32
    %2 = arith.cmpi eq, %arg1, %c0_i32 : i32
    %3 = arith.extui %2 : i1 to i32
    %c0_i32_0 = arith.constant 0 : i32
    %4 = arith.cmpi ne, %3, %c0_i32_0 : i32
    scf.if %4 {
      %c0_16 = arith.constant 0 : index
      %c0_17 = arith.constant 0 : index
      %29 = vector.load %arg3[%c0_16, %c0_17] : memref<128x1024xbf16, #tpu.memory_space<vmem>>, vector<128x1024xbf16>
      %c0_18 = arith.constant 0 : index
      %c0_19 = arith.constant 0 : index
      %30 = vector.load %arg5[%c0_18, %c0_19] : memref<1024x128xbf16, #tpu.memory_space<vmem>>, vector<1024x128xbf16>
      %cst_20 = arith.constant dense<0.000000e+00> : vector<128x128xf32>
      %31 = tpu.matmul %29, %30, %cst_20 {dimension_numbers = #tpu.dot_dimension_numbers<[1], [0], [0], [1], [0, 0, 1, 1], [], []>} : vector<128x1024xbf16>, vector<1024x128xbf16>, vector<128x128xf32> -> vector<128x128xf32>
      %32 = arith.truncf %31 : vector<128x128xf32> to vector<128x128xbf16>
      %c0_21 = arith.constant 0 : index
      %c0_22 = arith.constant 0 : index
      %33 = vector.load %arg6[%c0_21, %c0_22] : memref<128x128xbf16, #tpu.memory_space<vmem>>, vector<128x128xbf16>
      %cst_23 = arith.constant dense<0.000000e+00> : vector<128x128xf32>
      %34 = tpu.matmul %32, %33, %cst_23 {dimension_numbers = #tpu.dot_dimension_numbers<[1], [0], [0], [1], [0, 0, 1, 1], [], []>} : vector<128x128xbf16>, vector<128x128xbf16>, vector<128x128xf32> -> vector<128x128xf32>
      %cst_24 = arith.constant 0.000000e+00 : f32
      %35 = vector.broadcast %cst_24 : f32 to vector<128x128xf32>
      %36 = arith.maximumf %34, %35 : vector<128x128xf32>
      %37 = arith.truncf %36 : vector<128x128xf32> to vector<128x128xbf16>
      %c0_25 = arith.constant 0 : index
      %c0_26 = arith.constant 0 : index
      %38 = vector.load %arg7[%c0_25, %c0_26] : memref<128x128xbf16, #tpu.memory_space<vmem>>, vector<128x128xbf16>
      %cst_27 = arith.constant dense<0.000000e+00> : vector<128x128xf32>
      %39 = tpu.matmul %37, %38, %cst_27 {dimension_numbers = #tpu.dot_dimension_numbers<[1], [0], [0], [1], [0, 0, 1, 1], [], []>} : vector<128x128xbf16>, vector<128x128xbf16>, vector<128x128xf32> -> vector<128x128xf32>
      %40 = arith.mulf %39, %39 : vector<128x128xf32>
      %cst_28 = arith.constant dense<0.000000e+00> : vector<128xf32>
      %41 = vector.multi_reduction <add>, %40, %cst_28 [1] : vector<128x128xf32> to vector<128xf32>
      %42 = vector.shape_cast %41 : vector<128xf32> to vector<128x1xf32>
      %cst_29 = arith.constant 1.000000e-24 : f32
      %43 = vector.broadcast %cst_29 : f32 to vector<128x1xf32>
      %44 = arith.maximumf %42, %43 : vector<128x1xf32>
      %45 = math.rsqrt %44 : vector<128x1xf32>
      %46 = vector.broadcast %45 : vector<128x1xf32> to vector<128x128xf32>
      %47 = arith.mulf %39, %46 : vector<128x128xf32>
      %48 = arith.truncf %47 : vector<128x128xf32> to vector<128x128xbf16>
      %c0_30 = arith.constant 0 : index
      %c0_31 = arith.constant 0 : index
      %49 = vector.load %arg11[%c0_30, %c0_31] : memref<128x128xbf16, #tpu.memory_space<vmem>>, vector<128x128xbf16>
      tpu.vector_store %arg11[%c0_30, %c0_31], %48 {strides = array<i32>} : memref<128x128xbf16, #tpu.memory_space<vmem>>, vector<128x128xbf16>,
    } else {
    }
    %c0_1 = arith.constant 0 : index
    %c0_2 = arith.constant 0 : index
    %5 = vector.load %arg4[%c0_1, %c0_2] : memref<128x128xbf16, #tpu.memory_space<vmem>>, vector<128x128xbf16>
    %c0_3 = arith.constant 0 : index
    %c0_4 = arith.constant 0 : index
    %6 = vector.load %arg8[%c0_3, %c0_4] : memref<128x128xbf16, #tpu.memory_space<vmem>>, vector<128x128xbf16>
    %cst = arith.constant dense<0.000000e+00> : vector<128x128xf32>
    %7 = tpu.matmul %5, %6, %cst {dimension_numbers = #tpu.dot_dimension_numbers<[1], [0], [0], [1], [0, 0, 1, 1], [], []>} : vector<128x128xbf16>, vector<128x128xbf16>, vector<128x128xf32> -> vector<128x128xf32>
    %cst_5 = arith.constant 0.000000e+00 : f32
    %8 = vector.broadcast %cst_5 : f32 to vector<128x128xf32>
    %9 = arith.maximumf %7, %8 : vector<128x128xf32>
    %10 = arith.truncf %9 : vector<128x128xf32> to vector<128x128xbf16>
    %c0_6 = arith.constant 0 : index
    %c0_7 = arith.constant 0 : index
    %11 = vector.load %arg9[%c0_6, %c0_7] : memref<128x128xbf16, #tpu.memory_space<vmem>>, vector<128x128xbf16>
    %cst_8 = arith.constant dense<0.000000e+00> : vector<128x128xf32>
    %12 = tpu.matmul %10, %11, %cst_8 {dimension_numbers = #tpu.dot_dimension_numbers<[1], [0], [0], [1], [0, 0, 1, 1], [], []>} : vector<128x128xbf16>, vector<128x128xbf16>, vector<128x128xf32> -> vector<128x128xf32>
    %13 = arith.mulf %12, %12 : vector<128x128xf32>
    %cst_9 = arith.constant dense<0.000000e+00> : vector<128xf32>
    %14 = vector.multi_reduction <add>, %13, %cst_9 [1] : vector<128x128xf32> to vector<128xf32>
    %15 = vector.shape_cast %14 : vector<128xf32> to vector<128x1xf32>
    %cst_10 = arith.constant 1.000000e-24 : f32
    %16 = vector.broadcast %cst_10 : f32 to vector<128x1xf32>
    %17 = arith.maximumf %15, %16 : vector<128x1xf32>
    %18 = math.rsqrt %17 : vector<128x1xf32>
    %19 = vector.broadcast %18 : vector<128x1xf32> to vector<128x128xf32>
    %20 = arith.mulf %12, %19 : vector<128x128xf32>
    %21 = arith.truncf %20 : vector<128x128xf32> to vector<128x128xbf16>
    %c0_11 = arith.constant 0 : index
    %c0_12 = arith.constant 0 : index
    %22 = vector.load %arg11[%c0_11, %c0_12] : memref<128x128xbf16, #tpu.memory_space<vmem>>, vector<128x128xbf16>
    %cst_13 = arith.constant dense<0.000000e+00> : vector<128x128xf32>
    %23 = tpu.matmul %22, %21, %cst_13 {dimension_numbers = #tpu.dot_dimension_numbers<[1], [1], [0], [0], [0, 0, 1, 0], [], []>} : vector<128x128xbf16>, vector<128x128xbf16>, vector<128x128xf32> -> vector<128x128xf32>
    %24 = vector.broadcast %0 : f32 to vector<128x128xf32>
    %25 = arith.mulf %23, %24 : vector<128x128xf32>
    %26 = vector.broadcast %1 : f32 to vector<128x128xf32>
    %27 = arith.addf %25, %26 : vector<128x128xf32>
    %c0_14 = arith.constant 0 : index
    %c0_15 = arith.constant 0 : index
    %28 = vector.load %arg10[%c0_14, %c0_15] : memref<128x128xf32, #tpu.memory_space<vmem>>, vector<128x128xf32>
    tpu.vector_store %arg10[%c0_14, %c0_15], %27 {strides = array<i32>} : memref<128x128xf32, #tpu.memory_space<vmem>>, vector<128x128xf32>,
    return
  }
  func.func @transform_0(%arg0: i32, %arg1: i32) -> i32 {
    %c0_i32 = arith.constant 0 : i32
    %c0_i32_0 = arith.constant 0 : i32
    return %c0_i32 : i32
  }
  func.func @transform_1(%arg0: i32, %arg1: i32) -> (i32, i32) {
    %c0_i32 = arith.constant 0 : i32
    %c0_i32_0 = arith.constant 0 : i32
    return %arg0, %c0_i32 : i32, i32
  }
  func.func @transform_2(%arg0: i32, %arg1: i32) -> (i32, i32) {
    %c0_i32 = arith.constant 0 : i32
    %c0_i32_0 = arith.constant 0 : i32
    return %arg1, %c0_i32 : i32, i32
  }
  func.func @transform_3(%arg0: i32, %arg1: i32) -> (i32, i32) {
    %c0_i32 = arith.constant 0 : i32
    %c0_i32_0 = arith.constant 0 : i32
    %c0_i32_1 = arith.constant 0 : i32
    return %c0_i32, %c0_i32_0 : i32, i32
  }
  func.func @transform_4(%arg0: i32, %arg1: i32) -> (i32, i32) {
    %c0_i32 = arith.constant 0 : i32
    %c0_i32_0 = arith.constant 0 : i32
    %c0_i32_1 = arith.constant 0 : i32
    return %c0_i32, %c0_i32_0 : i32, i32
  }
  func.func @transform_5(%arg0: i32, %arg1: i32) -> (i32, i32) {
    %c0_i32 = arith.constant 0 : i32
    %c0_i32_0 = arith.constant 0 : i32
    %c0_i32_1 = arith.constant 0 : i32
    return %c0_i32, %c0_i32_0 : i32, i32
  }
  func.func @transform_6(%arg0: i32, %arg1: i32) -> (i32, i32) {
    %c0_i32 = arith.constant 0 : i32
    %c0_i32_0 = arith.constant 0 : i32
    %c0_i32_1 = arith.constant 0 : i32
    return %c0_i32, %c0_i32_0 : i32, i32
  }
  func.func @transform_7(%arg0: i32, %arg1: i32) -> (i32, i32) {
    %c0_i32 = arith.constant 0 : i32
    %c0_i32_0 = arith.constant 0 : i32
    %c0_i32_1 = arith.constant 0 : i32
    return %c0_i32, %c0_i32_0 : i32, i32
  }
  func.func @transform_8(%arg0: i32, %arg1: i32) -> (i32, i32) {
    %c0_i32 = arith.constant 0 : i32
    return %arg0, %arg1 : i32, i32
  }
}

</mosaic_0001>

<llo_original>
// kernel: tpu_custom_call.1
$region0: #{tpu_custom_call.1}
  #allocation0 [shape = 'u32[]', space=smem, size = 0x4, offset = 0x4, fixed_abs, tag = 'smem constant byte address 0x4 - core index']
  #allocation1 [shape = 'u32[72,128]{1,0:T(1,128)}', space=vmem, size = 0x9000, scoped, tag = 'internal scratch']
  #allocation2 [shape = 'bf16[128,128]{1,0:T(8,128)(2,1)}', space=vmem, size = 0x8000, scoped, tag = 'scratch operand']
  %s0 = inlined_call_operand.hbm [shape: f32[2], index: 0, kind: input, shape index: {}]
  %s1 = inlined_call_operand.hbm [shape: bf16[256,1024], index: 1, kind: input, shape index: {}]
  %s2 = inlined_call_operand.hbm [shape: bf16[256,128], index: 2, kind: input, shape index: {}]
  %s3 = inlined_call_operand.hbm [shape: bf16[1024,128], index: 3, kind: input, shape index: {}]
  %s4 = inlined_call_operand.hbm [shape: bf16[128,128], index: 4, kind: input, shape index: {}]
  %s5 = inlined_call_operand.hbm [shape: bf16[128,128], index: 5, kind: input, shape index: {}]
  %s6 = inlined_call_operand.hbm [shape: bf16[128,128], index: 6, kind: input, shape index: {}]
  %s7 = inlined_call_operand.hbm [shape: bf16[128,128], index: 7, kind: input, shape index: {}]
  %s8 = inlined_call_operand.hbm [shape: f32[256,256], index: 8, kind: output, shape index: {}]
  %s9 = sld [smem:[#allocation0]]
  $region101: #{tpu_custom_call.1} parent=0
    _
  %s11 = ssub.s32 1, %s9
  %s12 = scalar_select 0, %s11, %s9
  $region1: #{tpu_custom_call.1} parent=0
    #allocation3 [shape = 'u8[512]{0}', space=smem, size = 0x200, scoped, tag = 'input window, operand 0, single buffered']
    #allocation4 [shape = 's32[2]{0}', space=sflag, size = 0x8, scoped, tag = 'scoped memory for tpu_custom_call.1']
    #allocation5 [shape = 's32[2]{0}', space=sflag, size = 0x8, scoped, tag = 'scoped memory for tpu_custom_call.1']
    #allocation6 [shape = 's32[2]{0}', space=sflag, size = 0x8, scoped, tag = 'scoped memory for tpu_custom_call.1']
    #allocation7 [shape = 'u8[524288]{0}', space=vmem, size = 0x80000, scoped, tag = 'input window, operand 1']
    #allocation8 [shape = 'u8[65536]{0}', space=vmem, size = 0x10000, scoped, tag = 'input window, operand 2']
    #allocation9 [shape = 's32[2]{0}', space=sflag, size = 0x8, scoped, tag = 'scoped memory for tpu_custom_call.1']
    #allocation10 [shape = 'u8[262144]{0}', space=vmem, size = 0x40000, scoped, tag = 'input window, operand 3, single buffered']
    #allocation11 [shape = 'u8[32768]{0}', space=vmem, size = 0x8000, scoped, tag = 'input window, operand 4, single buffered']
    #allocation12 [shape = 's32[1]{0}', space=sflag, size = 0x4, scoped, tag = 'scoped memory for tpu_custom_call.1']
    #allocation13 [shape = 'u8[32768]{0}', space=vmem, size = 0x8000, scoped, tag = 'input window, operand 5, single buffered']
    #allocation14 [shape = 'u8[32768]{0}', space=vmem, size = 0x8000, scoped, tag = 'input window, operand 6, single buffered']
    #allocation15 [shape = 's32[1]{0}', space=sflag, size = 0x4, scoped, tag = 'scoped memory for tpu_custom_call.1']
    #allocation16 [shape = 'u8[32768]{0}', space=vmem, size = 0x8000, scoped, tag = 'input window, operand 7, single buffered']
    #allocation17 [shape = 'u8[131072]{0}', space=vmem, size = 0x20000, scoped, tag = 'output window, operand 0']
    %13 = vsyncpa [#allocation6], 0
    %14 = vsyncpa [#allocation4], 0
    %s15 = scalar_lea.sflag [#allocation4], 1
    %16 = vsyncpa %s15, 0
    %17 = vsyncpa [#allocation9], 0
    %s18 = scalar_lea.sflag [#allocation9], 1
    %19 = vsyncpa %s18, 0
    %20 = vsyncpa [#allocation12], 0
    %21 = vsyncpa [#allocation15], 0
    %22 = vsyncpa [#allocation5], 0
    %s23 = scalar_lea.sflag [#allocation5], 1
    %24 = vsyncpa %s23, 0
    loop: start=0, step=1, limit=6
    $region2: #{tpu_custom_call.1} parent=1 // loop_pre_header
      _
    $region3: #{tpu_custom_call.1} parent=1 // loop_header
      %s26 = sphi 0, %s30
      %p27 = scmp.ge.s32.totalorder %s26, 6
      %s33 = sphi 0, %s45
      %s34 = sphi 0, %s41
      %s35 = sphi 0, %s33
      %s36 = sphi 0, %s34
      %s37 = sphi 0, %s35
      %s38 = sphi 0, %s36
      %s46 = sphi 0, %s46
      %s48 = sphi 0, %s46
      %s49 = sphi 0, %s48
      %s63 = sphi 0, %s49
      %s69 = sphi 0, %s71
      %s72 = sphi 0, %s69
      %s73 = sphi 0, %s72
      %s89 = sphi 0, %s73
      %s95 = sphi 0, %s97
      %s98 = sphi 0, %s95
      %s99 = sphi 0, %s98
      %s115 = sphi 0, %s99
      %s119 = sphi 0, %s119
      %s121 = sphi 0, %s119
      %s122 = sphi 0, %s121
      %s136 = sphi 0, %s122
      %s140 = sphi 0, %s140
      %s142 = sphi 0, %s140
      %s143 = sphi 0, %s142
      %s157 = sphi 0, %s143
      %s161 = sphi 0, %s161
      %s163 = sphi 0, %s161
      %s164 = sphi 0, %s163
      %s178 = sphi 0, %s164
      %s182 = sphi 0, %s182
      %s184 = sphi 0, %s182
      %s185 = sphi 0, %s184
      %s199 = sphi 0, %s185
      %s203 = sphi 0, %s203
      %s205 = sphi 0, %s203
      %s206 = sphi 0, %s205
      %s220 = sphi 0, %s206
      %s228 = sphi 0, %s230
      %s231 = sphi 0, %s228
      %s232 = sphi 0, %s231
      %s248 = sphi 0, %s232
    $region4: #{tpu_custom_call.1} parent=1 // loop_header_branch
      %29 = sbr.rel (%p27) target = $region8
    $region5: #{tpu_custom_call.1} parent=1 // loop_body
      %s31 = ssub.s32 %s26, 1
      %s32 = ssub.s32 %s26, 2
      %s39 = sadd.s32 1, %s34
      %p40 = scmp.ge.s32.totalorder %s39, 2
      %s41 = scalar_select %p40, 0, %s39
      %s42 = sadd.s32 1, %s33
      %s43 = scalar_select %p40, %s42, %s33
      %p44 = scmp.ge.s32.totalorder %s43, 2
      %s45 = scalar_select %p44, 0, %s43
      %s47 = sadd.s32 %s46, 1
      %p50 = scmp.eq.s32.totalorder %s26, 3
      %p51 = scmp.ne.s32.totalorder %s46, %s48
      %p52 = scmp.eq.s32.totalorder %s26, 0
      %p53 = por %p51, %p52
      %p54 = scmp.ne.s32.totalorder %s46, %s48
      %p55 = scmp.eq.s32.totalorder %s31, 3
      %p56 = por %p54, %p55
      %p57 = scmp.ne.s32.totalorder %s48, %s49
      %p58 = scmp.eq.s32.totalorder %s31, 0
      %p59 = por %p57, %p58
      %p60 = scmp.ne.s32.totalorder %s48, %s49
      %p61 = scmp.eq.s32.totalorder %s32, 3
      %p62 = por %p60, %p61
      %p64 = scmp.ne.s32.totalorder %s49, %s63
      %p65 = scmp.eq.s32.totalorder %s32, 0
      %p66 = por %p64, %p65
      %s67 = ssub.s32 %s33, %s45
      %p68 = scmp.eq.s32.totalorder %s67, 0
      %s70 = sadd.s32 %s69, 1
      %s71 = scalar_select %p68, %s69, %s70
      %p74 = pneg %p68
      %p75 = scmp.eq.s32.totalorder %s26, 3
      %p76 = por %p74, %p75
      %p77 = scmp.ne.s32.totalorder %s69, %s72
      %p78 = scmp.eq.s32.totalorder %s26, 0
      %p79 = por %p77, %p78
      %p80 = scmp.ne.s32.totalorder %s69, %s72
      %p81 = scmp.eq.s32.totalorder %s31, 3
      %p82 = por %p80, %p81
      %p83 = scmp.ne.s32.totalorder %s72, %s73
      %p84 = scmp.eq.s32.totalorder %s31, 0
      %p85 = por %p83, %p84
      %p86 = scmp.ne.s32.totalorder %s72, %s73
      %p87 = scmp.eq.s32.totalorder %s32, 3
      %p88 = por %p86, %p87
      %p90 = scmp.ne.s32.totalorder %s73, %s89
      %p91 = scmp.eq.s32.totalorder %s32, 0
      %p92 = por %p90, %p91
      %s93 = ssub.s32 %s34, %s41
      %p94 = scmp.eq.s32.totalorder %s93, 0
      %s96 = sadd.s32 %s95, 1
      %s97 = scalar_select %p94, %s95, %s96
      %p100 = pneg %p94
      %p101 = scmp.eq.s32.totalorder %s26, 3
      %p102 = por %p100, %p101
      %p103 = scmp.ne.s32.totalorder %s95, %s98
      %p104 = scmp.eq.s32.totalorder %s26, 0
      %p105 = por %p103, %p104
      %p106 = scmp.ne.s32.totalorder %s95, %s98
      %p107 = scmp.eq.s32.totalorder %s31, 3
      %p108 = por %p106, %p107
      %p109 = scmp.ne.s32.totalorder %s98, %s99
      %p110 = scmp.eq.s32.totalorder %s31, 0
      %p111 = por %p109, %p110
      %p112 = scmp.ne.s32.totalorder %s98, %s99
      %p113 = scmp.eq.s32.totalorder %s32, 3
      %p114 = por %p112, %p113
      %p116 = scmp.ne.s32.totalorder %s99, %s115
      %p117 = scmp.eq.s32.totalorder %s32, 0
      %p118 = por %p116, %p117
      %s120 = sadd.s32 %s119, 1
      %p123 = scmp.eq.s32.totalorder %s26, 3
      %p124 = scmp.ne.s32.totalorder %s119, %s121
      %p125 = scmp.eq.s32.totalorder %s26, 0
      %p126 = por %p124, %p125
      %p127 = scmp.ne.s32.totalorder %s119, %s121
      %p128 = scmp.eq.s32.totalorder %s31, 3
      %p129 = por %p127, %p128
      %p130 = scmp.ne.s32.totalorder %s121, %s122
      %p131 = scmp.eq.s32.totalorder %s31, 0
      %p132 = por %p130, %p131
      %p133 = scmp.ne.s32.totalorder %s121, %s122
      %p134 = scmp.eq.s32.totalorder %s32, 3
      %p135 = por %p133, %p134
      %p137 = scmp.ne.s32.totalorder %s122, %s136
      %p138 = scmp.eq.s32.totalorder %s32, 0
      %p139 = por %p137, %p138
      %s141 = sadd.s32 %s140, 1
      %p144 = scmp.eq.s32.totalorder %s26, 3
      %p145 = scmp.ne.s32.totalorder %s140, %s142
      %p146 = scmp.eq.s32.totalorder %s26, 0
      %p147 = por %p145, %p146
      %p148 = scmp.ne.s32.totalorder %s140, %s142
      %p149 = scmp.eq.s32.totalorder %s31, 3
      %p150 = por %p148, %p149
      %p151 = scmp.ne.s32.totalorder %s142, %s143
      %p152 = scmp.eq.s32.totalorder %s31, 0
      %p153 = por %p151, %p152
      %p154 = scmp.ne.s32.totalorder %s142, %s143
      %p155 = scmp.eq.s32.totalorder %s32, 3
      %p156 = por %p154, %p155
      %p158 = scmp.ne.s32.totalorder %s143, %s157
      %p159 = scmp.eq.s32.totalorder %s32, 0
      %p160 = por %p158, %p159
      %s162 = sadd.s32 %s161, 1
      %p165 = scmp.eq.s32.totalorder %s26, 3
      %p166 = scmp.ne.s32.totalorder %s161, %s163
      %p167 = scmp.eq.s32.totalorder %s26, 0
      %p168 = por %p166, %p167
      %p169 = scmp.ne.s32.totalorder %s161, %s163
      %p170 = scmp.eq.s32.totalorder %s31, 3
      %p171 = por %p169, %p170
      %p172 = scmp.ne.s32.totalorder %s163, %s164
      %p173 = scmp.eq.s32.totalorder %s31, 0
      %p174 = por %p172, %p173
      %p175 = scmp.ne.s32.totalorder %s163, %s164
      %p176 = scmp.eq.s32.totalorder %s32, 3
      %p177 = por %p175, %p176
      %p179 = scmp.ne.s32.totalorder %s164, %s178
      %p180 = scmp.eq.s32.totalorder %s32, 0
      %p181 = por %p179, %p180
      %s183 = sadd.s32 %s182, 1
      %p186 = scmp.eq.s32.totalorder %s26, 3
      %p187 = scmp.ne.s32.totalorder %s182, %s184
      %p188 = scmp.eq.s32.totalorder %s26, 0
      %p189 = por %p187, %p188
      %p190 = scmp.ne.s32.totalorder %s182, %s184
      %p191 = scmp.eq.s32.totalorder %s31, 3
      %p192 = por %p190, %p191
      %p193 = scmp.ne.s32.totalorder %s184, %s185
      %p194 = scmp.eq.s32.totalorder %s31, 0
      %p195 = por %p193, %p194
      %p196 = scmp.ne.s32.totalorder %s184, %s185
      %p197 = scmp.eq.s32.totalorder %s32, 3
      %p198 = por %p196, %p197
      %p200 = scmp.ne.s32.totalorder %s185, %s199
      %p201 = scmp.eq.s32.totalorder %s32, 0
      %p202 = por %p200, %p201
      %s204 = sadd.s32 %s203, 1
      %p207 = scmp.eq.s32.totalorder %s26, 3
      %p208 = scmp.ne.s32.totalorder %s203, %s205
      %p209 = scmp.eq.s32.totalorder %s26, 0
      %p210 = por %p208, %p209
      %p211 = scmp.ne.s32.totalorder %s203, %s205
      %p212 = scmp.eq.s32.totalorder %s31, 3
      %p213 = por %p211, %p212
      %p214 = scmp.ne.s32.totalorder %s205, %s206
      %p215 = scmp.eq.s32.totalorder %s31, 0
      %p216 = por %p214, %p215
      %p217 = scmp.ne.s32.totalorder %s205, %s206
      %p218 = scmp.eq.s32.totalorder %s32, 3
      %p219 = por %p217, %p218
      %p221 = scmp.ne.s32.totalorder %s206, %s220
      %p222 = scmp.eq.s32.totalorder %s32, 0
      %p223 = por %p221, %p222
      %s224 = ssub.s32 %s33, %s45
      %s225 = ssub.s32 %s34, %s41
      %s226 = sor.u32 %s224, %s225
      %p227 = scmp.eq.s32.totalorder %s226, 0
      %s229 = sadd.s32 %s228, 1
      %s230 = scalar_select %p227, %s228, %s229
      %p233 = pneg %p227
      %p234 = scmp.eq.s32.totalorder %s26, 3
      %p235 = por %p233, %p234
      %p236 = scmp.ne.s32.totalorder %s228, %s231
      %p237 = scmp.eq.s32.totalorder %s26, 0
      %p238 = por %p236, %p237
      %p239 = scmp.ne.s32.totalorder %s228, %s231
      %p240 = scmp.eq.s32.totalorder %s31, 3
      %p241 = por %p239, %p240
      %p242 = scmp.ne.s32.totalorder %s231, %s232
      %p243 = scmp.eq.s32.totalorder %s31, 0
      %p244 = por %p242, %p243
      %p245 = scmp.ne.s32.totalorder %s231, %s232
      %p246 = scmp.eq.s32.totalorder %s32, 3
      %p247 = por %p245, %p246
      %p249 = scmp.ne.s32.totalorder %s232, %s248
      %p250 = scmp.eq.s32.totalorder %s32, 0
      %p251 = por %p249, %p250
      %p252 = scmp.le.s32.totalorder 1, %s26
      %p253 = scmp.lt.s32.totalorder %s26, 5
      %p254 = pnand %p252, %p253
      %p255 = pneg %p254
      // Predicated region
      $region9: #{tpu_custom_call.1} parent=5 // pred_check
        _
      $region10: #{tpu_custom_call.1} parent=5 // pred_check_branch
        %257 = sbr.rel (%p254) target = $region12
      $region11: #{tpu_custom_call.1} parent=5 // pred_region
        %s258 = ssub.s32 %s26, 1
        // Predicated region
        $region13: #{tpu_custom_call.1} parent=11 // pred_check
          %p259 = pneg %p59
        $region14: #{tpu_custom_call.1} parent=11 // pred_check_branch
          %261 = sbr.rel (%p259) target = $region16
        $region15: #{tpu_custom_call.1} parent=11 // pred_region
          %263 = vsyncadd [#allocation6], 0
          %s265 = sshll.u32 %s0, 4
          %s266 = int_to_ptr.hbm [resolvable:$true] %s265
          %268 = dma.hbm_to_smem %s266, 16, [#allocation3], [#allocation6]
        $region16: #{tpu_custom_call.1} parent=11 // pred_fallthru
          _
        // Predicated region
        $region17: #{tpu_custom_call.1} parent=11 // pred_check
          %p269 = pneg %p132
        $region18: #{tpu_custom_call.1} parent=11 // pred_check_branch
          %271 = sbr.rel (%p269) target = $region20
        $region19: #{tpu_custom_call.1} parent=11 // pred_region
          %273 = vsyncadd [#allocation9], 0
          %s274 = sshll.u32 %s3, 4
          %s275 = int_to_ptr.hbm [resolvable:$true] %s274
          %s276 = sshll.u32 [#allocation10], 4
          %s277 = int_to_ptr.vmem [resolvable:$true] %s276
          %282 = dma.hbm_to_vmem [thread:$0]  %s275, 8192, %s277, [#allocation9], 64, 64, 4
        $region20: #{tpu_custom_call.1} parent=11 // pred_fallthru
          _
        // Predicated region
        $region21: #{tpu_custom_call.1} parent=11 // pred_check
          %p283 = pneg %p153
        $region22: #{tpu_custom_call.1} parent=11 // pred_check_branch
          %285 = sbr.rel (%p283) target = $region24
        $region23: #{tpu_custom_call.1} parent=11 // pred_region
          %287 = vsyncadd [#allocation12], 0
          %s288 = sshll.u32 %s4, 4
          %s289 = int_to_ptr.hbm [resolvable:$true] %s288
          %s290 = sshll.u32 [#allocation11], 4
          %s291 = int_to_ptr.vmem [resolvable:$true] %s290
          %296 = dma.hbm_to_vmem [thread:$0]  %s289, 1024, %s291, [#allocation12], 64, 64, 4
        $region24: #{tpu_custom_call.1} parent=11 // pred_fallthru
          _
        // Predicated region
        $region25: #{tpu_custom_call.1} parent=11 // pred_check
          %p297 = pneg %p174
        $region26: #{tpu_custom_call.1} parent=11 // pred_check_branch
          %299 = sbr.rel (%p297) target = $region28
        $region27: #{tpu_custom_call.1} parent=11 // pred_region
          %301 = vsyncadd [#allocation12], 0
          %s302 = sshll.u32 %s5, 4
          %s303 = int_to_ptr.hbm [resolvable:$true] %s302
          %s304 = sshll.u32 [#allocation13], 4
          %s305 = int_to_ptr.vmem [resolvable:$true] %s304
          %310 = dma.hbm_to_vmem [thread:$0]  %s303, 1024, %s305, [#allocation12], 64, 64, 4
        $region28: #{tpu_custom_call.1} parent=11 // pred_fallthru
          _
        // Predicated region
        $region29: #{tpu_custom_call.1} parent=11 // pred_check
          %p311 = pneg %p195
        $region30: #{tpu_custom_call.1} parent=11 // pred_check_branch
          %313 = sbr.rel (%p311) target = $region32
        $region31: #{tpu_custom_call.1} parent=11 // pred_region
          %315 = vsyncadd [#allocation15], 0
          %s316 = sshll.u32 %s6, 4
          %s317 = int_to_ptr.hbm [resolvable:$true] %s316
          %s318 = sshll.u32 [#allocation14], 4
          %s319 = int_to_ptr.vmem [resolvable:$true] %s318
          %324 = dma.hbm_to_vmem [thread:$0]  %s317, 1024, %s319, [#allocation15], 64, 64, 4
        $region32: #{tpu_custom_call.1} parent=11 // pred_fallthru
          _
        // Predicated region
        $region33: #{tpu_custom_call.1} parent=11 // pred_check
          %p325 = pneg %p216
        $region34: #{tpu_custom_call.1} parent=11 // pred_check_branch
          %327 = sbr.rel (%p325) target = $region36
        $region35: #{tpu_custom_call.1} parent=11 // pred_region
          %329 = vsyncadd [#allocation15], 0
          %s330 = sshll.u32 %s7, 4
          %s331 = int_to_ptr.hbm [resolvable:$true] %s330
          %s332 = sshll.u32 [#allocation16], 4
          %s333 = int_to_ptr.vmem [resolvable:$true] %s332
          %338 = dma.hbm_to_vmem [thread:$0]  %s331, 1024, %s333, [#allocation15], 64, 64, 4
        $region36: #{tpu_custom_call.1} parent=11 // pred_fallthru
          _
      $region12: #{tpu_custom_call.1} parent=5 // pred_fallthru
        _
      %p339 = scmp.lt.s32.totalorder %s26, 4
      // Predicated region
      $region37: #{tpu_custom_call.1} parent=5 // pred_check
        %p340 = pneg %p339
      $region38: #{tpu_custom_call.1} parent=5 // pred_check_branch
        %342 = sbr.rel (%p340) target = $region40
      $region39: #{tpu_custom_call.1} parent=5 // pred_region
        // Predicated region
        $region41: #{tpu_custom_call.1} parent=39 // pred_check
          %p343 = pneg %p79
        $region42: #{tpu_custom_call.1} parent=39 // pred_check_branch
          %345 = sbr.rel (%p343) target = $region44
        $region43: #{tpu_custom_call.1} parent=39 // pred_region
          %s346 = sand.u32 %s69, 1
          %s347 = scalar_lea.sflag [#allocation4], %s346
          %s348 = sand.u32 %s69, 1
          %s349 = smul.addr %s348, 512
          %s350 = scalar_lea.vmem [#allocation7], %s349
          %s351 = smul.u32 16, %s33
          %353 = vsyncadd %s347, 0
          %s354 = smul.addr %s351, 8
          %s355 = smul.addr %s354, 4
          %s356 = scalar_lea.hbm %s1, %s355
          %s357 = sshll.u32 %s356, 4
          %s358 = int_to_ptr.hbm [resolvable:$true] %s357
          %s359 = sshll.u32 %s350, 4
          %s360 = int_to_ptr.vmem [resolvable:$true] %s359
          %365 = dma.hbm_to_vmem [thread:$0]  %s358, 8192, %s360, %s347, 512, 512, 32
        $region44: #{tpu_custom_call.1} parent=39 // pred_fallthru
          _
        // Predicated region
        $region45: #{tpu_custom_call.1} parent=39 // pred_check
          %p366 = pneg %p105
        $region46: #{tpu_custom_call.1} parent=39 // pred_check_branch
          %368 = sbr.rel (%p366) target = $region48
        $region47: #{tpu_custom_call.1} parent=39 // pred_region
          %s369 = sand.u32 %s26, 1
          %s370 = scalar_lea.sflag [#allocation9], %s369
          %s371 = sand.u32 %s95, 1
          %s372 = smul.addr %s371, 64
          %s373 = scalar_lea.vmem [#allocation8], %s372
          %s374 = smul.u32 16, %s34
          %376 = vsyncadd %s370, 0
          %s377 = smul.addr %s374, 4
          %s378 = scalar_lea.hbm %s2, %s377
          %s379 = sshll.u32 %s378, 4
          %s380 = int_to_ptr.hbm [resolvable:$true] %s379
          %s381 = sshll.u32 %s373, 4
          %s382 = int_to_ptr.vmem [resolvable:$true] %s381
          %387 = dma.hbm_to_vmem [thread:$0]  %s380, 1024, %s382, %s370, 64, 64, 4
        $region48: #{tpu_custom_call.1} parent=39 // pred_fallthru
          _
      $region40: #{tpu_custom_call.1} parent=5 // pred_fallthru
        _
      %p388 = scmp.le.s32.totalorder 1, %s26
      %p389 = scmp.lt.s32.totalorder %s26, 5
      %p390 = pnand %p388, %p389
      %p391 = pneg %p390
      // Predicated region
      $region49: #{tpu_custom_call.1} parent=5 // pred_check
        _
      $region50: #{tpu_custom_call.1} parent=5 // pred_check_branch
        %393 = sbr.rel (%p390) target = $region52
      $region51: #{tpu_custom_call.1} parent=5 // pred_region
        %s394 = ssub.s32 %s26, 1
        // Predicated region
        $region53: #{tpu_custom_call.1} parent=51 // pred_check
          %p395 = pneg %p59
        $region54: #{tpu_custom_call.1} parent=51 // pred_check_branch
          %397 = sbr.rel (%p395) target = $region56
        $region55: #{tpu_custom_call.1} parent=51 // pred_region
          %399 = dma.done [#allocation6], 16
        $region56: #{tpu_custom_call.1} parent=51 // pred_fallthru
          _
        %s400 = sand.u32 %s72, 1
        %s401 = scalar_lea.sflag [#allocation4], %s400
        %s402 = sand.u32 %s72, 1
        %s403 = smul.addr %s402, 512
        %s404 = scalar_lea.vmem [#allocation7], %s403
        // Predicated region
        $region57: #{tpu_custom_call.1} parent=51 // pred_check
          %p405 = pneg %p85
        $region58: #{tpu_custom_call.1} parent=51 // pred_check_branch
          %407 = sbr.rel (%p405) target = $region60
        $region59: #{tpu_custom_call.1} parent=51 // pred_region
          %409 = dma.done %s401, 8192
        $region60: #{tpu_custom_call.1} parent=51 // pred_fallthru
          _
        %s410 = sand.u32 %s31, 1
        %s411 = scalar_lea.sflag [#allocation9], %s410
        %s412 = sand.u32 %s98, 1
        %s413 = smul.addr %s412, 64
        %s414 = scalar_lea.vmem [#allocation8], %s413
        // Predicated region
        $region61: #{tpu_custom_call.1} parent=51 // pred_check
          %p415 = pneg %p111
        $region62: #{tpu_custom_call.1} parent=51 // pred_check_branch
          %417 = sbr.rel (%p415) target = $region64
        $region63: #{tpu_custom_call.1} parent=51 // pred_region
          %419 = dma.done %s411, 1024
        $region64: #{tpu_custom_call.1} parent=51 // pred_fallthru
          _
        // Predicated region
        $region65: #{tpu_custom_call.1} parent=51 // pred_check
          %p420 = pneg %p132
        $region66: #{tpu_custom_call.1} parent=51 // pred_check_branch
          %422 = sbr.rel (%p420) target = $region68
        $region67: #{tpu_custom_call.1} parent=51 // pred_region
          %424 = dma.done [#allocation9], 8192
        $region68: #{tpu_custom_call.1} parent=51 // pred_fallthru
          _
        // Predicated region
        $region69: #{tpu_custom_call.1} parent=51 // pred_check
          %p425 = pneg %p153
        $region70: #{tpu_custom_call.1} parent=51 // pred_check_branch
          %427 = sbr.rel (%p425) target = $region72
        $region71: #{tpu_custom_call.1} parent=51 // pred_region
          %429 = dma.done [#allocation12], 1024
        $region72: #{tpu_custom_call.1} parent=51 // pred_fallthru
          _
        // Predicated region
        $region73: #{tpu_custom_call.1} parent=51 // pred_check
          %p430 = pneg %p174
        $region74: #{tpu_custom_call.1} parent=51 // pred_check_branch
          %432 = sbr.rel (%p430) target = $region76
        $region75: #{tpu_custom_call.1} parent=51 // pred_region
          %434 = dma.done [#allocation12], 1024
        $region76: #{tpu_custom_call.1} parent=51 // pred_fallthru
          _
        // Predicated region
        $region77: #{tpu_custom_call.1} parent=51 // pred_check
          %p435 = pneg %p195
        $region78: #{tpu_custom_call.1} parent=51 // pred_check_branch
          %437 = sbr.rel (%p435) target = $region80
        $region79: #{tpu_custom_call.1} parent=51 // pred_region
          %439 = dma.done [#allocation15], 1024
        $region80: #{tpu_custom_call.1} parent=51 // pred_fallthru
          _
        // Predicated region
        $region81: #{tpu_custom_call.1} parent=51 // pred_check
          %p440 = pneg %p216
        $region82: #{tpu_custom_call.1} parent=51 // pred_check_branch
          %442 = sbr.rel (%p440) target = $region84
        $region83: #{tpu_custom_call.1} parent=51 // pred_region
          %444 = dma.done [#allocation15], 1024
        $region84: #{tpu_custom_call.1} parent=51 // pred_fallthru
          _
        %445 = sfence
        %p446 = pneg %p59
        %p447 = pneg %p56
        %s448 = sand.u32 %s72, 1
        %s449 = scalar_lea.sflag [#allocation4], %s448
        %s450 = sand.u32 %s72, 1
        %s451 = smul.addr %s450, 512
        %s452 = scalar_lea.vmem [#allocation7], %s451
        %p453 = pneg %p85
        %p454 = pneg %p82
        %s455 = sand.u32 %s31, 1
        %s456 = scalar_lea.sflag [#allocation9], %s455
        %s457 = sand.u32 %s98, 1
        %s458 = smul.addr %s457, 64
        %s459 = scalar_lea.vmem [#allocation8], %s458
        %p460 = pneg %p111
        %p461 = pneg %p108
        %p462 = pneg %p132
        %p463 = pneg %p129
        %p464 = pneg %p153
        %p465 = pneg %p150
        %p466 = pneg %p174
        %p467 = pneg %p171
        %p468 = pneg %p195
        %p469 = pneg %p192
        %p470 = pneg %p216
        %p471 = pneg %p213
        %p472 = pneg %p244
        %p473 = pneg %p241
        %s474 = sand.u32 %s231, 1
        %s475 = scalar_lea.sflag [#allocation5], %s474
        %s476 = sand.u32 %s231, 1
        %s477 = smul.addr %s476, 128
        %s478 = scalar_lea.vmem [#allocation17], %s477
        %s479 = smul.u32 16, %s35
        %s480 = smul.u32 16, %s36
        %s481 = smul.u32 16, %s35
        %s482 = sld [smem:[#allocation3]]
        %s483 = sld [smem:[#allocation3 + $0x1]]
        %p484 = scmp.eq.s32.totalorder %s36, 0
        // Predicated region
        $region85: #{tpu_custom_call.1} parent=51 // pred_check
          %p485 = pneg %p484
        $region86: #{tpu_custom_call.1} parent=51 // pred_check_branch
          %487 = sbr.rel (%p485) target = $region88
        $region87: #{tpu_custom_call.1} parent=51 // pred_region
          %v488 = vld [vmem:[%s404] sm:$0xff]
          %v489 = vld [vmem:[%s404 + $0x8] sm:$0xff]
          %v490 = vld [vmem:[%s404 + $0x10] sm:$0xff]
          %v491 = vld [vmem:[%s404 + $0x18] sm:$0xff]
          %v492 = vld [vmem:[%s404 + $0x20] sm:$0xff]
          %v493 = vld [vmem:[%s404 + $0x28] sm:$0xff]
          %v494 = vld [vmem:[%s404 + $0x30] sm:$0xff]
          %v495 = vld [vmem:[%s404 + $0x38] sm:$0xff]
          %v496 = vld [vmem:[%s404 + $0x40] sm:$0xff]
          %v497 = vld [vmem:[%s404 + $0x48] sm:$0xff]
          %v498 = vld [vmem:[%s404 + $0x50] sm:$0xff]
          %v499 = vld [vmem:[%s404 + $0x58] sm:$0xff]
          %v500 = vld [vmem:[%s404 + $0x60] sm:$0xff]
          %v501 = vld [vmem:[%s404 + $0x68] sm:$0xff]
          %v502 = vld [vmem:[%s404 + $0x70] sm:$0xff]
          %v503 = vld [vmem:[%s404 + $0x78] sm:$0xff]
          %v504 = vld [vmem:[%s404 + $0x80] sm:$0xff]
          %v505 = vld [vmem:[%s404 + $0x88] sm:$0xff]
          %v506 = vld [vmem:[%s404 + $0x90] sm:$0xff]
          %v507 = vld [vmem:[%s404 + $0x98] sm:$0xff]
          %v508 = vld [vmem:[%s404 + $0xa0] sm:$0xff]
          %v509 = vld [vmem:[%s404 + $0xa8] sm:$0xff]
          %v510 = vld [vmem:[%s404 + $0xb0] sm:$0xff]
          %v511 = vld [vmem:[%s404 + $0xb8] sm:$0xff]
          %v512 = vld [vmem:[%s404 + $0xc0] sm:$0xff]
          %v513 = vld [vmem:[%s404 + $0xc8] sm:$0xff]
          %v514 = vld [vmem:[%s404 + $0xd0] sm:$0xff]
          %v515 = vld [vmem:[%s404 + $0xd8] sm:$0xff]
          %v516 = vld [vmem:[%s404 + $0xe0] sm:$0xff]
          %v517 = vld [vmem:[%s404 + $0xe8] sm:$0xff]
          %v518 = vld [vmem:[%s404 + $0xf0] sm:$0xff]
          %v519 = vld [vmem:[%s404 + $0xf8] sm:$0xff]
          %v520 = vld [vmem:[%s404 + $0x100] sm:$0xff]
          %v521 = vld [vmem:[%s404 + $0x108] sm:$0xff]
          %v522 = vld [vmem:[%s404 + $0x110] sm:$0xff]
          %v523 = vld [vmem:[%s404 + $0x118] sm:$0xff]
          %v524 = vld [vmem:[%s404 + $0x120] sm:$0xff]
          %v525 = vld [vmem:[%s404 + $0x128] sm:$0xff]
          %v526 = vld [vmem:[%s404 + $0x130] sm:$0xff]
          %v527 = vld [vmem:[%s404 + $0x138] sm:$0xff]
          %v528 = vld [vmem:[%s404 + $0x140] sm:$0xff]
          %v529 = vld [vmem:[%s404 + $0x148] sm:$0xff]
          %v530 = vld [vmem:[%s404 + $0x150] sm:$0xff]
          %v531 = vld [vmem:[%s404 + $0x158] sm:$0xff]
          %v532 = vld [vmem:[%s404 + $0x160] sm:$0xff]
          %v533 = vld [vmem:[%s404 + $0x168] sm:$0xff]
          %v534 = vld [vmem:[%s404 + $0x170] sm:$0xff]
          %v535 = vld [vmem:[%s404 + $0x178] sm:$0xff]
          %v536 = vld [vmem:[%s404 + $0x180] sm:$0xff]
          %v537 = vld [vmem:[%s404 + $0x188] sm:$0xff]
          %v538 = vld [vmem:[%s404 + $0x190] sm:$0xff]
          %v539 = vld [vmem:[%s404 + $0x198] sm:$0xff]
          %v540 = vld [vmem:[%s404 + $0x1a0] sm:$0xff]
          %v541 = vld [vmem:[%s404 + $0x1a8] sm:$0xff]
          %v542 = vld [vmem:[%s404 + $0x1b0] sm:$0xff]
          %v543 = vld [vmem:[%s404 + $0x1b8] sm:$0xff]
          %v544 = vld [vmem:[%s404 + $0x1c0] sm:$0xff]
          %v545 = vld [vmem:[%s404 + $0x1c8] sm:$0xff]
          %v546 = vld [vmem:[%s404 + $0x1d0] sm:$0xff]
          %v547 = vld [vmem:[%s404 + $0x1d8] sm:$0xff]
          %v548 = vld [vmem:[%s404 + $0x1e0] sm:$0xff]
          %v549 = vld [vmem:[%s404 + $0x1e8] sm:$0xff]
          %v550 = vld [vmem:[%s404 + $0x1f0] sm:$0xff]
          %v551 = vld [vmem:[%s404 + $0x1f8] sm:$0xff]
          %v552 = vld [vmem:[#allocation10] sm:$0xf]
          %v553 = vld [vmem:[#allocation10 + $0x4] sm:$0xf]
          %v554 = vld [vmem:[#allocation10 + $0x8] sm:$0xf]
          %v555 = vld [vmem:[#allocation10 + $0xc] sm:$0xf]
          %v556 = vld [vmem:[#allocation10 + $0x10] sm:$0xf]
          %v557 = vld [vmem:[#allocation10 + $0x14] sm:$0xf]
          %v558 = vld [vmem:[#allocation10 + $0x18] sm:$0xf]
          %v559 = vld [vmem:[#allocation10 + $0x1c] sm:$0xf]
          %v560 = vld [vmem:[#allocation10 + $0x20] sm:$0xf]
          %v561 = vld [vmem:[#allocation10 + $0x24] sm:$0xf]
          %v562 = vld [vmem:[#allocation10 + $0x28] sm:$0xf]
          %v563 = vld [vmem:[#allocation10 + $0x2c] sm:$0xf]
          %v564 = vld [vmem:[#allocation10 + $0x30] sm:$0xf]
          %v565 = vld [vmem:[#allocation10 + $0x34] sm:$0xf]
          %v566 = vld [vmem:[#allocation10 + $0x38] sm:$0xf]
          %v567 = vld [vmem:[#allocation10 + $0x3c] sm:$0xf]
          %v568 = vld [vmem:[#allocation10 + $0x40] sm:$0xf]
          %v569 = vld [vmem:[#allocation10 + $0x44] sm:$0xf]
          %v570 = vld [vmem:[#allocation10 + $0x48] sm:$0xf]
          %v571 = vld [vmem:[#allocation10 + $0x4c] sm:$0xf]
          %v572 = vld [vmem:[#allocation10 + $0x50] sm:$0xf]
          %v573 = vld [vmem:[#allocation10 + $0x54] sm:$0xf]
          %v574 = vld [vmem:[#allocation10 + $0x58] sm:$0xf]
          %v575 = vld [vmem:[#allocation10 + $0x5c] sm:$0xf]
          %v576 = vld [vmem:[#allocation10 + $0x60] sm:$0xf]
          %v577 = vld [vmem:[#allocation10 + $0x64] sm:$0xf]
          %v578 = vld [vmem:[#allocation10 + $0x68] sm:$0xf]
          %v579 = vld [vmem:[#allocation10 + $0x6c] sm:$0xf]
          %v580 = vld [vmem:[#allocation10 + $0x70] sm:$0xf]
          %v581 = vld [vmem:[#allocation10 + $0x74] sm:$0xf]
          %v582 = vld [vmem:[#allocation10 + $0x78] sm:$0xf]
          %v583 = vld [vmem:[#allocation10 + $0x7c] sm:$0xf]
          %v584 = vld [vmem:[#allocation10 + $0x80] sm:$0xf]
          %v585 = vld [vmem:[#allocation10 + $0x84] sm:$0xf]
          %v586 = vld [vmem:[#allocation10 + $0x88] sm:$0xf]
          %v587 = vld [vmem:[#allocation10 + $0x8c] sm:$0xf]
          %v588 = vld [vmem:[#allocation10 + $0x90] sm:$0xf]
          %v589 = vld [vmem:[#allocation10 + $0x94] sm:$0xf]
          %v590 = vld [vmem:[#allocation10 + $0x98] sm:$0xf]
          %v591 = vld [vmem:[#allocation10 + $0x9c] sm:$0xf]
          %v592 = vld [vmem:[#allocation10 + $0xa0] sm:$0xf]
          %v593 = vld [vmem:[#allocation10 + $0xa4] sm:$0xf]
          %v594 = vld [vmem:[#allocation10 + $0xa8] sm:$0xf]
          %v595 = vld [vmem:[#allocation10 + $0xac] sm:$0xf]
          %v596 = vld [vmem:[#allocation10 + $0xb0] sm:$0xf]
          %v597 = vld [vmem:[#allocation10 + $0xb4] sm:$0xf]
          %v598 = vld [vmem:[#allocation10 + $0xb8] sm:$0xf]
          %v599 = vld [vmem:[#allocation10 + $0xbc] sm:$0xf]
          %v600 = vld [vmem:[#allocation10 + $0xc0] sm:$0xf]
          %v601 = vld [vmem:[#allocation10 + $0xc4] sm:$0xf]
          %v602 = vld [vmem:[#allocation10 + $0xc8] sm:$0xf]
          %v603 = vld [vmem:[#allocation10 + $0xcc] sm:$0xf]
          %v604 = vld [vmem:[#allocation10 + $0xd0] sm:$0xf]
          %v605 = vld [vmem:[#allocation10 + $0xd4] sm:$0xf]
          %v606 = vld [vmem:[#allocation10 + $0xd8] sm:$0xf]
          %v607 = vld [vmem:[#allocation10 + $0xdc] sm:$0xf]
          %v608 = vld [vmem:[#allocation10 + $0xe0] sm:$0xf]
          %v609 = vld [vmem:[#allocation10 + $0xe4] sm:$0xf]
          %v610 = vld [vmem:[#allocation10 + $0xe8] sm:$0xf]
          %v611 = vld [vmem:[#allocation10 + $0xec] sm:$0xf]
          %v612 = vld [vmem:[#allocation10 + $0xf0] sm:$0xf]
          %v613 = vld [vmem:[#allocation10 + $0xf4] sm:$0xf]
          %v614 = vld [vmem:[#allocation10 + $0xf8] sm:$0xf]
          %v615 = vld [vmem:[#allocation10 + $0xfc] sm:$0xf]
          %v616 = vld [vmem:[#allocation10 + $0x100] sm:$0xf]
          %v617 = vld [vmem:[#allocation10 + $0x104] sm:$0xf]
          %v618 = vld [vmem:[#allocation10 + $0x108] sm:$0xf]
          %v619 = vld [vmem:[#allocation10 + $0x10c] sm:$0xf]
          %v620 = vld [vmem:[#allocation10 + $0x110] sm:$0xf]
          %v621 = vld [vmem:[#allocation10 + $0x114] sm:$0xf]
          %v622 = vld [vmem:[#allocation10 + $0x118] sm:$0xf]
          %v623 = vld [vmem:[#allocation10 + $0x11c] sm:$0xf]
          %v624 = vld [vmem:[#allocation10 + $0x120] sm:$0xf]
          %v625 = vld [vmem:[#allocation10 + $0x124] sm:$0xf]
          %v626 = vld [vmem:[#allocation10 + $0x128] sm:$0xf]
          %v627 = vld [vmem:[#allocation10 + $0x12c] sm:$0xf]
          %v628 = vld [vmem:[#allocation10 + $0x130] sm:$0xf]
          %v629 = vld [vmem:[#allocation10 + $0x134] sm:$0xf]
          %v630 = vld [vmem:[#allocation10 + $0x138] sm:$0xf]
          %v631 = vld [vmem:[#allocation10 + $0x13c] sm:$0xf]
          %v632 = vld [vmem:[#allocation10 + $0x140] sm:$0xf]
          %v633 = vld [vmem:[#allocation10 + $0x144] sm:$0xf]
          %v634 = vld [vmem:[#allocation10 + $0x148] sm:$0xf]
          %v635 = vld [vmem:[#allocation10 + $0x14c] sm:$0xf]
          %v636 = vld [vmem:[#allocation10 + $0x150] sm:$0xf]
          %v637 = vld [vmem:[#allocation10 + $0x154] sm:$0xf]
          %v638 = vld [vmem:[#allocation10 + $0x158] sm:$0xf]
          %v639 = vld [vmem:[#allocation10 + $0x15c] sm:$0xf]
          %v640 = vld [vmem:[#allocation10 + $0x160] sm:$0xf]
          %v641 = vld [vmem:[#allocation10 + $0x164] sm:$0xf]
          %v642 = vld [vmem:[#allocation10 + $0x168] sm:$0xf]
          %v643 = vld [vmem:[#allocation10 + $0x16c] sm:$0xf]
          %v644 = vld [vmem:[#allocation10 + $0x170] sm:$0xf]
          %v645 = vld [vmem:[#allocation10 + $0x174] sm:$0xf]
          %v646 = vld [vmem:[#allocation10 + $0x178] sm:$0xf]
          %v647 = vld [vmem:[#allocation10 + $0x17c] sm:$0xf]
          %v648 = vld [vmem:[#allocation10 + $0x180] sm:$0xf]
          %v649 = vld [vmem:[#allocation10 + $0x184] sm:$0xf]
          %v650 = vld [vmem:[#allocation10 + $0x188] sm:$0xf]
          %v651 = vld [vmem:[#allocation10 + $0x18c] sm:$0xf]
          %v652 = vld [vmem:[#allocation10 + $0x190] sm:$0xf]
          %v653 = vld [vmem:[#allocation10 + $0x194] sm:$0xf]
          %v654 = vld [vmem:[#allocation10 + $0x198] sm:$0xf]
          %v655 = vld [vmem:[#allocation10 + $0x19c] sm:$0xf]
          %v656 = vld [vmem:[#allocation10 + $0x1a0] sm:$0xf]
          %v657 = vld [vmem:[#allocation10 + $0x1a4] sm:$0xf]
          %v658 = vld [vmem:[#allocation10 + $0x1a8] sm:$0xf]
          %v659 = vld [vmem:[#allocation10 + $0x1ac] sm:$0xf]
          %v660 = vld [vmem:[#allocation10 + $0x1b0] sm:$0xf]
          %v661 = vld [vmem:[#allocation10 + $0x1b4] sm:$0xf]
          %v662 = vld [vmem:[#allocation10 + $0x1b8] sm:$0xf]
          %v663 = vld [vmem:[#allocation10 + $0x1bc] sm:$0xf]
          %v664 = vld [vmem:[#allocation10 + $0x1c0] sm:$0xf]
          %v665 = vld [vmem:[#allocation10 + $0x1c4] sm:$0xf]
          %v666 = vld [vmem:[#allocation10 + $0x1c8] sm:$0xf]
          %v667 = vld [vmem:[#allocation10 + $0x1cc] sm:$0xf]
          %v668 = vld [vmem:[#allocation10 + $0x1d0] sm:$0xf]
          %v669 = vld [vmem:[#allocation10 + $0x1d4] sm:$0xf]
          %v670 = vld [vmem:[#allocation10 + $0x1d8] sm:$0xf]
          %v671 = vld [vmem:[#allocation10 + $0x1dc] sm:$0xf]
          %v672 = vld [vmem:[#allocation10 + $0x1e0] sm:$0xf]
          %v673 = vld [vmem:[#allocation10 + $0x1e4] sm:$0xf]
          %v674 = vld [vmem:[#allocation10 + $0x1e8] sm:$0xf]
          %v675 = vld [vmem:[#allocation10 + $0x1ec] sm:$0xf]
          %v676 = vld [vmem:[#allocation10 + $0x1f0] sm:$0xf]
          %v677 = vld [vmem:[#allocation10 + $0x1f4] sm:$0xf]
          %v678 = vld [vmem:[#allocation10 + $0x1f8] sm:$0xf]
          %v679 = vld [vmem:[#allocation10 + $0x1fc] sm:$0xf]
          %v744 = vunpack.c.l.b16 %v488
          %v745 = vunpack.c.h.b16 %v488
          %v746 = vunpack.c.l.b16 %v489
          %v747 = vunpack.c.h.b16 %v489
          %v748 = vunpack.c.l.b16 %v490
          %v749 = vunpack.c.h.b16 %v490
          %v750 = vunpack.c.l.b16 %v491
          %v751 = vunpack.c.h.b16 %v491
          %v752 = vunpack.c.l.b16 %v492
          %v753 = vunpack.c.h.b16 %v492
          %v754 = vunpack.c.l.b16 %v493
          %v755 = vunpack.c.h.b16 %v493
          %v756 = vunpack.c.l.b16 %v494
          %v757 = vunpack.c.h.b16 %v494
          %v758 = vunpack.c.l.b16 %v495
          %v759 = vunpack.c.h.b16 %v495
          %v760 = vunpack.c.l.b16 %v496
          %v761 = vunpack.c.h.b16 %v496
          %v762 = vunpack.c.l.b16 %v497
          %v763 = vunpack.c.h.b16 %v497
          %v764 = vunpack.c.l.b16 %v498
          %v765 = vunpack.c.h.b16 %v498
          %v766 = vunpack.c.l.b16 %v499
          %v767 = vunpack.c.h.b16 %v499
          %v768 = vunpack.c.l.b16 %v500
          %v769 = vunpack.c.h.b16 %v500
          %v770 = vunpack.c.l.b16 %v501
          %v771 = vunpack.c.h.b16 %v501
          %v772 = vunpack.c.l.b16 %v502
          %v773 = vunpack.c.h.b16 %v502
          %v774 = vunpack.c.l.b16 %v503
          %v775 = vunpack.c.h.b16 %v503
          %v776 = vunpack.c.l.b16 %v504
          %v777 = vunpack.c.h.b16 %v504
          %v778 = vunpack.c.l.b16 %v505
          %v779 = vunpack.c.h.b16 %v505
          %v780 = vunpack.c.l.b16 %v506
          %v781 = vunpack.c.h.b16 %v506
          %v782 = vunpack.c.l.b16 %v507
          %v783 = vunpack.c.h.b16 %v507
          %v784 = vunpack.c.l.b16 %v508
          %v785 = vunpack.c.h.b16 %v508
          %v786 = vunpack.c.l.b16 %v509
          %v787 = vunpack.c.h.b16 %v509
          %v788 = vunpack.c.l.b16 %v510
          %v789 = vunpack.c.h.b16 %v510
          %v790 = vunpack.c.l.b16 %v511
          %v791 = vunpack.c.h.b16 %v511
          %v792 = vunpack.c.l.b16 %v512
          %v793 = vunpack.c.h.b16 %v512
          %v794 = vunpack.c.l.b16 %v513
          %v795 = vunpack.c.h.b16 %v513
          %v796 = vunpack.c.l.b16 %v514
          %v797 = vunpack.c.h.b16 %v514
          %v798 = vunpack.c.l.b16 %v515
          %v799 = vunpack.c.h.b16 %v515
          %v800 = vunpack.c.l.b16 %v516
          %v801 = vunpack.c.h.b16 %v516
          %v802 = vunpack.c.l.b16 %v517
          %v803 = vunpack.c.h.b16 %v517
          %v804 = vunpack.c.l.b16 %v518
          %v805 = vunpack.c.h.b16 %v518
          %v806 = vunpack.c.l.b16 %v519
          %v807 = vunpack.c.h.b16 %v519
          %v808 = vunpack.c.l.b16 %v520
          %v809 = vunpack.c.h.b16 %v520
          %v810 = vunpack.c.l.b16 %v521
          %v811 = vunpack.c.h.b16 %v521
          %v812 = vunpack.c.l.b16 %v522
          %v813 = vunpack.c.h.b16 %v522
          %v814 = vunpack.c.l.b16 %v523
          %v815 = vunpack.c.h.b16 %v523
          %v816 = vunpack.c.l.b16 %v524
          %v817 = vunpack.c.h.b16 %v524
          %v818 = vunpack.c.l.b16 %v525
          %v819 = vunpack.c.h.b16 %v525
          %v820 = vunpack.c.l.b16 %v526
          %v821 = vunpack.c.h.b16 %v526
          %v822 = vunpack.c.l.b16 %v527
          %v823 = vunpack.c.h.b16 %v527
          %v824 = vunpack.c.l.b16 %v528
          %v825 = vunpack.c.h.b16 %v528
          %v826 = vunpack.c.l.b16 %v529
          %v827 = vunpack.c.h.b16 %v529
          %v828 = vunpack.c.l.b16 %v530
          %v829 = vunpack.c.h.b16 %v530
          %v830 = vunpack.c.l.b16 %v531
          %v831 = vunpack.c.h.b16 %v531
          %v832 = vunpack.c.l.b16 %v532
          %v833 = vunpack.c.h.b16 %v532
          %v834 = vunpack.c.l.b16 %v533
          %v835 = vunpack.c.h.b16 %v533
          %v836 = vunpack.c.l.b16 %v534
          %v837 = vunpack.c.h.b16 %v534
          %v838 = vunpack.c.l.b16 %v535
          %v839 = vunpack.c.h.b16 %v535
          %v840 = vunpack.c.l.b16 %v536
          %v841 = vunpack.c.h.b16 %v536
          %v842 = vunpack.c.l.b16 %v537
          %v843 = vunpack.c.h.b16 %v537
          %v844 = vunpack.c.l.b16 %v538
          %v845 = vunpack.c.h.b16 %v538
          %v846 = vunpack.c.l.b16 %v539
          %v847 = vunpack.c.h.b16 %v539
          %v848 = vunpack.c.l.b16 %v540
          %v849 = vunpack.c.h.b16 %v540
          %v850 = vunpack.c.l.b16 %v541
          %v851 = vunpack.c.h.b16 %v541
          %v852 = vunpack.c.l.b16 %v542
          %v853 = vunpack.c.h.b16 %v542
          %v854 = vunpack.c.l.b16 %v543
          %v855 = vunpack.c.h.b16 %v543
          %v856 = vunpack.c.l.b16 %v544
          %v857 = vunpack.c.h.b16 %v544
          %v858 = vunpack.c.l.b16 %v545
          %v859 = vunpack.c.h.b16 %v545
          %v860 = vunpack.c.l.b16 %v546
          %v861 = vunpack.c.h.b16 %v546
          %v862 = vunpack.c.l.b16 %v547
          %v863 = vunpack.c.h.b16 %v547
          %v864 = vunpack.c.l.b16 %v548
          %v865 = vunpack.c.h.b16 %v548
          %v866 = vunpack.c.l.b16 %v549
          %v867 = vunpack.c.h.b16 %v549
          %v868 = vunpack.c.l.b16 %v550
          %v869 = vunpack.c.h.b16 %v550
          %v870 = vunpack.c.l.b16 %v551
          %v871 = vunpack.c.h.b16 %v551
          %v872 = vpack.c.b16 %v752, %v744
          %v873 = vpack.c.b16 %v753, %v745
          %v874 = vpack.c.b16 %v754, %v746
          %v875 = vpack.c.b16 %v755, %v747
          %v876 = vpack.c.b16 %v756, %v748
          %v877 = vpack.c.b16 %v757, %v749
          %v878 = vpack.c.b16 %v758, %v750
          %v879 = vpack.c.b16 %v759, %v751
          %v880 = vpack.c.b16 %v768, %v760
          %v881 = vpack.c.b16 %v769, %v761
          %v882 = vpack.c.b16 %v770, %v762
          %v883 = vpack.c.b16 %v771, %v763
          %v884 = vpack.c.b16 %v772, %v764
          %v885 = vpack.c.b16 %v773, %v765
          %v886 = vpack.c.b16 %v774, %v766
          %v887 = vpack.c.b16 %v775, %v767
          %v888 = vpack.c.b16 %v784, %v776
          %v889 = vpack.c.b16 %v785, %v777
          %v890 = vpack.c.b16 %v786, %v778
          %v891 = vpack.c.b16 %v787, %v779
          %v892 = vpack.c.b16 %v788, %v780
          %v893 = vpack.c.b16 %v789, %v781
          %v894 = vpack.c.b16 %v790, %v782
          %v895 = vpack.c.b16 %v791, %v783
          %v896 = vpack.c.b16 %v800, %v792
          %v897 = vpack.c.b16 %v801, %v793
          %v898 = vpack.c.b16 %v802, %v794
          %v899 = vpack.c.b16 %v803, %v795
          %v900 = vpack.c.b16 %v804, %v796
          %v901 = vpack.c.b16 %v805, %v797
          %v902 = vpack.c.b16 %v806, %v798
          %v903 = vpack.c.b16 %v807, %v799
          %v904 = vpack.c.b16 %v816, %v808
          %v905 = vpack.c.b16 %v817, %v809
          %v906 = vpack.c.b16 %v818, %v810
          %v907 = vpack.c.b16 %v819, %v811
          %v908 = vpack.c.b16 %v820, %v812
          %v909 = vpack.c.b16 %v821, %v813
          %v910 = vpack.c.b16 %v822, %v814
          %v911 = vpack.c.b16 %v823, %v815
          %v912 = vpack.c.b16 %v832, %v824
          %v913 = vpack.c.b16 %v833, %v825
          %v914 = vpack.c.b16 %v834, %v826
          %v915 = vpack.c.b16 %v835, %v827
          %v916 = vpack.c.b16 %v836, %v828
          %v917 = vpack.c.b16 %v837, %v829
          %v918 = vpack.c.b16 %v838, %v830
          %v919 = vpack.c.b16 %v839, %v831
          %v920 = vpack.c.b16 %v848, %v840
          %v921 = vpack.c.b16 %v849, %v841
          %v922 = vpack.c.b16 %v850, %v842
          %v923 = vpack.c.b16 %v851, %v843
          %v924 = vpack.c.b16 %v852, %v844
          %v925 = vpack.c.b16 %v853, %v845
          %v926 = vpack.c.b16 %v854, %v846
          %v927 = vpack.c.b16 %v855, %v847
          %v928 = vpack.c.b16 %v864, %v856
          %v929 = vpack.c.b16 %v865, %v857
          %v930 = vpack.c.b16 %v866, %v858
          %v931 = vpack.c.b16 %v867, %v859
          %v932 = vpack.c.b16 %v868, %v860
          %v933 = vpack.c.b16 %v869, %v861
          %v934 = vpack.c.b16 %v870, %v862
          %v935 = vpack.c.b16 %v871, %v863
          %v1128 = vunpack.c.l.b16 %v552
          %v1129 = vunpack.c.l.b16 %v553
          %v1130 = vunpack.c.l.b16 %v554
          %v1131 = vunpack.c.l.b16 %v555
          %v1132 = vunpack.c.l.b16 %v556
          %v1133 = vunpack.c.l.b16 %v557
          %v1134 = vunpack.c.l.b16 %v558
          %v1135 = vunpack.c.l.b16 %v559
          %v1136 = vunpack.c.l.b16 %v560
          %v1137 = vunpack.c.l.b16 %v561
          %v1138 = vunpack.c.l.b16 %v562
          %v1139 = vunpack.c.l.b16 %v563
          %v1140 = vunpack.c.l.b16 %v564
          %v1141 = vunpack.c.l.b16 %v565
          %v1142 = vunpack.c.l.b16 %v566
          %v1143 = vunpack.c.l.b16 %v567
          %v1144 = vunpack.c.l.b16 %v568
          %v1145 = vunpack.c.l.b16 %v569
          %v1146 = vunpack.c.l.b16 %v570
          %v1147 = vunpack.c.l.b16 %v571
          %v1148 = vunpack.c.l.b16 %v572
          %v1149 = vunpack.c.l.b16 %v573
          %v1150 = vunpack.c.l.b16 %v574
          %v1151 = vunpack.c.l.b16 %v575
          %v1152 = vunpack.c.l.b16 %v576
          %v1153 = vunpack.c.l.b16 %v577
          %v1154 = vunpack.c.l.b16 %v578
          %v1155 = vunpack.c.l.b16 %v579
          %v1156 = vunpack.c.l.b16 %v580
          %v1157 = vunpack.c.l.b16 %v581
          %v1158 = vunpack.c.l.b16 %v582
          %v1159 = vunpack.c.l.b16 %v583
          %v1160 = vunpack.c.l.b16 %v584
          %v1161 = vunpack.c.l.b16 %v585
          %v1162 = vunpack.c.l.b16 %v586
          %v1163 = vunpack.c.l.b16 %v587
          %v1164 = vunpack.c.l.b16 %v588
          %v1165 = vunpack.c.l.b16 %v589
          %v1166 = vunpack.c.l.b16 %v590
          %v1167 = vunpack.c.l.b16 %v591
          %v1168 = vunpack.c.l.b16 %v592
          %v1169 = vunpack.c.l.b16 %v593
          %v1170 = vunpack.c.l.b16 %v594
          %v1171 = vunpack.c.l.b16 %v595
          %v1172 = vunpack.c.l.b16 %v596
          %v1173 = vunpack.c.l.b16 %v597
          %v1174 = vunpack.c.l.b16 %v598
          %v1175 = vunpack.c.l.b16 %v599
          %v1176 = vunpack.c.l.b16 %v600
          %v1177 = vunpack.c.l.b16 %v601
          %v1178 = vunpack.c.l.b16 %v602
          %v1179 = vunpack.c.l.b16 %v603
          %v1180 = vunpack.c.l.b16 %v604
          %v1181 = vunpack.c.l.b16 %v605
          %v1182 = vunpack.c.l.b16 %v606
          %v1183 = vunpack.c.l.b16 %v607
          %v1184 = vunpack.c.l.b16 %v608
          %v1185 = vunpack.c.l.b16 %v609
          %v1186 = vunpack.c.l.b16 %v610
          %v1187 = vunpack.c.l.b16 %v611
          %v1188 = vunpack.c.l.b16 %v612
          %v1189 = vunpack.c.l.b16 %v613
          %v1190 = vunpack.c.l.b16 %v614
          %v1191 = vunpack.c.l.b16 %v615
          %v1192 = vunpack.c.l.b16 %v616
          %v1193 = vunpack.c.l.b16 %v617
          %v1194 = vunpack.c.l.b16 %v618
          %v1195 = vunpack.c.l.b16 %v619
          %v1196 = vunpack.c.l.b16 %v620
          %v1197 = vunpack.c.l.b16 %v621
          %v1198 = vunpack.c.l.b16 %v622
          %v1199 = vunpack.c.l.b16 %v623
          %v1200 = vunpack.c.l.b16 %v624
          %v1201 = vunpack.c.l.b16 %v625
          %v1202 = vunpack.c.l.b16 %v626
          %v1203 = vunpack.c.l.b16 %v627
          %v1204 = vunpack.c.l.b16 %v628
          %v1205 = vunpack.c.l.b16 %v629
          %v1206 = vunpack.c.l.b16 %v630
          %v1207 = vunpack.c.l.b16 %v631
          %v1208 = vunpack.c.l.b16 %v632
          %v1209 = vunpack.c.l.b16 %v633
          %v1210 = vunpack.c.l.b16 %v634
          %v1211 = vunpack.c.l.b16 %v635
          %v1212 = vunpack.c.l.b16 %v636
          %v1213 = vunpack.c.l.b16 %v637
          %v1214 = vunpack.c.l.b16 %v638
          %v1215 = vunpack.c.l.b16 %v639
          %v1216 = vunpack.c.l.b16 %v640
          %v1217 = vunpack.c.l.b16 %v641
          %v1218 = vunpack.c.l.b16 %v642
          %v1219 = vunpack.c.l.b16 %v643
          %v1220 = vunpack.c.l.b16 %v644
          %v1221 = vunpack.c.l.b16 %v645
          %v1222 = vunpack.c.l.b16 %v646
          %v1223 = vunpack.c.l.b16 %v647
          %v1224 = vunpack.c.l.b16 %v648
          %v1225 = vunpack.c.l.b16 %v649
          %v1226 = vunpack.c.l.b16 %v650
          %v1227 = vunpack.c.l.b16 %v651
          %v1228 = vunpack.c.l.b16 %v652
          %v1229 = vunpack.c.l.b16 %v653
          %v1230 = vunpack.c.l.b16 %v654
          %v1231 = vunpack.c.l.b16 %v655
          %v1232 = vunpack.c.l.b16 %v656
          %v1233 = vunpack.c.l.b16 %v657
          %v1234 = vunpack.c.l.b16 %v658
          %v1235 = vunpack.c.l.b16 %v659
          %v1236 = vunpack.c.l.b16 %v660
          %v1237 = vunpack.c.l.b16 %v661
          %v1238 = vunpack.c.l.b16 %v662
          %v1239 = vunpack.c.l.b16 %v663
          %v1240 = vunpack.c.l.b16 %v664
          %v1241 = vunpack.c.l.b16 %v665
          %v1242 = vunpack.c.l.b16 %v666
          %v1243 = vunpack.c.l.b16 %v667
          %v1244 = vunpack.c.l.b16 %v668
          %v1245 = vunpack.c.l.b16 %v669
          %v1246 = vunpack.c.l.b16 %v670
          %v1247 = vunpack.c.l.b16 %v671
          %v1248 = vunpack.c.l.b16 %v672
          %v1249 = vunpack.c.l.b16 %v673
          %v1250 = vunpack.c.l.b16 %v674
          %v1251 = vunpack.c.l.b16 %v675
          %v1252 = vunpack.c.l.b16 %v676
          %v1253 = vunpack.c.l.b16 %v677
          %v1254 = vunpack.c.l.b16 %v678
          %v1255 = vunpack.c.l.b16 %v679
          %v1256 = vpack.c.b16 %v1129, %v1128
          %v1257 = vpack.c.b16 %v1131, %v1130
          %v1258 = vpack.c.b16 %v1133, %v1132
          %v1259 = vpack.c.b16 %v1135, %v1134
          %v1260 = vpack.c.b16 %v1137, %v1136
          %v1261 = vpack.c.b16 %v1139, %v1138
          %v1262 = vpack.c.b16 %v1141, %v1140
          %v1263 = vpack.c.b16 %v1143, %v1142
          %v1264 = vpack.c.b16 %v1145, %v1144
          %v1265 = vpack.c.b16 %v1147, %v1146
          %v1266 = vpack.c.b16 %v1149, %v1148
          %v1267 = vpack.c.b16 %v1151, %v1150
          %v1268 = vpack.c.b16 %v1153, %v1152
          %v1269 = vpack.c.b16 %v1155, %v1154
          %v1270 = vpack.c.b16 %v1157, %v1156
          %v1271 = vpack.c.b16 %v1159, %v1158
          %v1272 = vpack.c.b16 %v1161, %v1160
          %v1273 = vpack.c.b16 %v1163, %v1162
          %v1274 = vpack.c.b16 %v1165, %v1164
          %v1275 = vpack.c.b16 %v1167, %v1166
          %v1276 = vpack.c.b16 %v1169, %v1168
          %v1277 = vpack.c.b16 %v1171, %v1170
          %v1278 = vpack.c.b16 %v1173, %v1172
          %v1279 = vpack.c.b16 %v1175, %v1174
          %v1280 = vpack.c.b16 %v1177, %v1176
          %v1281 = vpack.c.b16 %v1179, %v1178
          %v1282 = vpack.c.b16 %v1181, %v1180
          %v1283 = vpack.c.b16 %v1183, %v1182
          %v1284 = vpack.c.b16 %v1185, %v1184
          %v1285 = vpack.c.b16 %v1187, %v1186
          %v1286 = vpack.c.b16 %v1189, %v1188
          %v1287 = vpack.c.b16 %v1191, %v1190
          %v1288 = vpack.c.b16 %v1193, %v1192
          %v1289 = vpack.c.b16 %v1195, %v1194
          %v1290 = vpack.c.b16 %v1197, %v1196
          %v1291 = vpack.c.b16 %v1199, %v1198
          %v1292 = vpack.c.b16 %v1201, %v1200
          %v1293 = vpack.c.b16 %v1203, %v1202
          %v1294 = vpack.c.b16 %v1205, %v1204
          %v1295 = vpack.c.b16 %v1207, %v1206
          %v1296 = vpack.c.b16 %v1209, %v1208
          %v1297 = vpack.c.b16 %v1211, %v1210
          %v1298 = vpack.c.b16 %v1213, %v1212
          %v1299 = vpack.c.b16 %v1215, %v1214
          %v1300 = vpack.c.b16 %v1217, %v1216
          %v1301 = vpack.c.b16 %v1219, %v1218
          %v1302 = vpack.c.b16 %v1221, %v1220
          %v1303 = vpack.c.b16 %v1223, %v1222
          %v1304 = vpack.c.b16 %v1225, %v1224
          %v1305 = vpack.c.b16 %v1227, %v1226
          %v1306 = vpack.c.b16 %v1229, %v1228
          %v1307 = vpack.c.b16 %v1231, %v1230
          %v1308 = vpack.c.b16 %v1233, %v1232
          %v1309 = vpack.c.b16 %v1235, %v1234
          %v1310 = vpack.c.b16 %v1237, %v1236
          %v1311 = vpack.c.b16 %v1239, %v1238
          %v1312 = vpack.c.b16 %v1241, %v1240
          %v1313 = vpack.c.b16 %v1243, %v1242
          %v1314 = vpack.c.b16 %v1245, %v1244
          %v1315 = vpack.c.b16 %v1247, %v1246
          %v1316 = vpack.c.b16 %v1249, %v1248
          %v1317 = vpack.c.b16 %v1251, %v1250
          %v1318 = vpack.c.b16 %v1253, %v1252
          %v1319 = vpack.c.b16 %v1255, %v1254
          %1384 = vmatpush.bf16.msra.mxu0 %v1263
          %1385 = vmatpush.bf16.msra.mxu0 %v1262
          %1386 = vmatpush.bf16.msra.mxu0 %v1261
          %1387 = vmatpush.bf16.msra.mxu0 %v1260
          %1388 = vmatpush.bf16.msra.mxu0 %v1259
          %1389 = vmatpush.bf16.msra.mxu0 %v1258
          %1390 = vmatpush.bf16.msra.mxu0 %v1257
          %1391 = vmatpush.bf16.msra.mxu0 %v1256
          %1392 = vmatmul.bf16.gmra.mxu0 %v872
          %v1393 = vpop.f32.mrf.mxu0
          %v1394 = vadd.f32 0.0, %v1393
          %v1395 = vpop.f32.mrf.mxu0
          %v1396 = vadd.f32 0.0, %v1395
          %1397 = vmatmul.bf16.gmra.mxu0 %v880
          %v1398 = vpop.f32.mrf.mxu0
          %v1399 = vadd.f32 0.0, %v1398
          %v1400 = vpop.f32.mrf.mxu0
          %v1401 = vadd.f32 0.0, %v1400
          %1402 = vmatmul.bf16.gmra.mxu0 %v888
          %v1403 = vpop.f32.mrf.mxu0
          %v1404 = vadd.f32 0.0, %v1403
          %v1405 = vpop.f32.mrf.mxu0
          %v1406 = vadd.f32 0.0, %v1405
          %1407 = vmatmul.bf16.gmra.mxu0 %v896
          %v1408 = vpop.f32.mrf.mxu0
          %v1409 = vadd.f32 0.0, %v1408
          %v1410 = vpop.f32.mrf.mxu0
          %v1411 = vadd.f32 0.0, %v1410
          %1412 = vmatmul.bf16.gmra.mxu0 %v904
          %v1413 = vpop.f32.mrf.mxu0
          %v1414 = vadd.f32 0.0, %v1413
          %v1415 = vpop.f32.mrf.mxu0
          %v1416 = vadd.f32 0.0, %v1415
          %1417 = vmatmul.bf16.gmra.mxu0 %v912
          %v1418 = vpop.f32.mrf.mxu0
          %v1419 = vadd.f32 0.0, %v1418
          %v1420 = vpop.f32.mrf.mxu0
          %v1421 = vadd.f32 0.0, %v1420
          %1422 = vmatmul.bf16.gmra.mxu0 %v920
          %v1423 = vpop.f32.mrf.mxu0
          %v1424 = vadd.f32 0.0, %v1423
          %v1425 = vpop.f32.mrf.mxu0
          %v1426 = vadd.f32 0.0, %v1425
          %1427 = vmatmul.bf16.gmra.mxu0 %v928
          %v1428 = vpop.f32.mrf.mxu0
          %v1429 = vadd.f32 0.0, %v1428
          %v1430 = vpop.f32.mrf.mxu0
          %v1431 = vadd.f32 0.0, %v1430
          %1432 = vdwg.mxu0
          %1433 = vmatpush.bf16.msra.mxu0 %v1271
          %1434 = vmatpush.bf16.msra.mxu0 %v1270
          %1435 = vmatpush.bf16.msra.mxu0 %v1269
          %1436 = vmatpush.bf16.msra.mxu0 %v1268
          %1437 = vmatpush.bf16.msra.mxu0 %v1267
          %1438 = vmatpush.bf16.msra.mxu0 %v1266
          %1439 = vmatpush.bf16.msra.mxu0 %v1265
          %1440 = vmatpush.bf16.msra.mxu0 %v1264
          %1441 = vmatmul.bf16.gmra.mxu0 %v873
          %v1442 = vpop.f32.mrf.mxu0
          %v1443 = vadd.f32 %v1394, %v1442
          %v1444 = vpop.f32.mrf.mxu0
          %v1445 = vadd.f32 %v1396, %v1444
          %1446 = vmatmul.bf16.gmra.mxu0 %v881
          %v1447 = vpop.f32.mrf.mxu0
          %v1448 = vadd.f32 %v1399, %v1447
          %v1449 = vpop.f32.mrf.mxu0
          %v1450 = vadd.f32 %v1401, %v1449
          %1451 = vmatmul.bf16.gmra.mxu0 %v889
          %v1452 = vpop.f32.mrf.mxu0
          %v1453 = vadd.f32 %v1404, %v1452
          %v1454 = vpop.f32.mrf.mxu0
          %v1455 = vadd.f32 %v1406, %v1454
          %1456 = vmatmul.bf16.gmra.mxu0 %v897
          %v1457 = vpop.f32.mrf.mxu0
          %v1458 = vadd.f32 %v1409, %v1457
          %v1459 = vpop.f32.mrf.mxu0
          %v1460 = vadd.f32 %v1411, %v1459
          %1461 = vmatmul.bf16.gmra.mxu0 %v905
          %v1462 = vpop.f32.mrf.mxu0
          %v1463 = vadd.f32 %v1414, %v1462
          %v1464 = vpop.f32.mrf.mxu0
          %v1465 = vadd.f32 %v1416, %v1464
          %1466 = vmatmul.bf16.gmra.mxu0 %v913
          %v1467 = vpop.f32.mrf.mxu0
          %v1468 = vadd.f32 %v1419, %v1467
          %v1469 = vpop.f32.mrf.mxu0
          %v1470 = vadd.f32 %v1421, %v1469
          %1471 = vmatmul.bf16.gmra.mxu0 %v921
          %v1472 = vpop.f32.mrf.mxu0
          %v1473 = vadd.f32 %v1424, %v1472
          %v1474 = vpop.f32.mrf.mxu0
          %v1475 = vadd.f32 %v1426, %v1474
          %1476 = vmatmul.bf16.gmra.mxu0 %v929
          %v1477 = vpop.f32.mrf.mxu0
          %v1478 = vadd.f32 %v1429, %v1477
          %v1479 = vpop.f32.mrf.mxu0
          %v1480 = vadd.f32 %v1431, %v1479
          %1481 = vdwg.mxu0
          %1482 = vmatpush.bf16.msra.mxu0 %v1279
          %1483 = vmatpush.bf16.msra.mxu0 %v1278
          %1484 = vmatpush.bf16.msra.mxu0 %v1277
          %1485 = vmatpush.bf16.msra.mxu0 %v1276
          %1486 = vmatpush.bf16.msra.mxu0 %v1275
          %1487 = vmatpush.bf16.msra.mxu0 %v1274
          %1488 = vmatpush.bf16.msra.mxu0 %v1273
          %1489 = vmatpush.bf16.msra.mxu0 %v1272
          %1490 = vmatmul.bf16.gmra.mxu0 %v874
          %v1491 = vpop.f32.mrf.mxu0
          %v1492 = vadd.f32 %v1443, %v1491
          %v1493 = vpop.f32.mrf.mxu0
          %v1494 = vadd.f32 %v1445, %v1493
          %1495 = vmatmul.bf16.gmra.mxu0 %v882
          %v1496 = vpop.f32.mrf.mxu0
          %v1497 = vadd.f32 %v1448, %v1496
          %v1498 = vpop.f32.mrf.mxu0
          %v1499 = vadd.f32 %v1450, %v1498
          %1500 = vmatmul.bf16.gmra.mxu0 %v890
          %v1501 = vpop.f32.mrf.mxu0
          %v1502 = vadd.f32 %v1453, %v1501
          %v1503 = vpop.f32.mrf.mxu0
          %v1504 = vadd.f32 %v1455, %v1503
          %1505 = vmatmul.bf16.gmra.mxu0 %v898
          %v1506 = vpop.f32.mrf.mxu0
          %v1507 = vadd.f32 %v1458, %v1506
          %v1508 = vpop.f32.mrf.mxu0
          %v1509 = vadd.f32 %v1460, %v1508
          %1510 = vmatmul.bf16.gmra.mxu0 %v906
          %v1511 = vpop.f32.mrf.mxu0
          %v1512 = vadd.f32 %v1463, %v1511
          %v1513 = vpop.f32.mrf.mxu0
          %v1514 = vadd.f32 %v1465, %v1513
          %1515 = vmatmul.bf16.gmra.mxu0 %v914
          %v1516 = vpop.f32.mrf.mxu0
          %v1517 = vadd.f32 %v1468, %v1516
          %v1518 = vpop.f32.mrf.mxu0
          %v1519 = vadd.f32 %v1470, %v1518
          %1520 = vmatmul.bf16.gmra.mxu0 %v922
          %v1521 = vpop.f32.mrf.mxu0
          %v1522 = vadd.f32 %v1473, %v1521
          %v1523 = vpop.f32.mrf.mxu0
          %v1524 = vadd.f32 %v1475, %v1523
          %1525 = vmatmul.bf16.gmra.mxu0 %v930
          %v1526 = vpop.f32.mrf.mxu0
          %v1527 = vadd.f32 %v1478, %v1526
          %v1528 = vpop.f32.mrf.mxu0
          %v1529 = vadd.f32 %v1480, %v1528
          %1530 = vdwg.mxu0
          %1531 = vmatpush.bf16.msra.mxu0 %v1287
          %1532 = vmatpush.bf16.msra.mxu0 %v1286
          %1533 = vmatpush.bf16.msra.mxu0 %v1285
          %1534 = vmatpush.bf16.msra.mxu0 %v1284
          %1535 = vmatpush.bf16.msra.mxu0 %v1283
          %1536 = vmatpush.bf16.msra.mxu0 %v1282
          %1537 = vmatpush.bf16.msra.mxu0 %v1281
          %1538 = vmatpush.bf16.msra.mxu0 %v1280
          %1539 = vmatmul.bf16.gmra.mxu0 %v875
          %v1540 = vpop.f32.mrf.mxu0
          %v1541 = vadd.f32 %v1492, %v1540
          %v1542 = vpop.f32.mrf.mxu0
          %v1543 = vadd.f32 %v1494, %v1542
          %1544 = vmatmul.bf16.gmra.mxu0 %v883
          %v1545 = vpop.f32.mrf.mxu0
          %v1546 = vadd.f32 %v1497, %v1545
          %v1547 = vpop.f32.mrf.mxu0
          %v1548 = vadd.f32 %v1499, %v1547
          %1549 = vmatmul.bf16.gmra.mxu0 %v891
          %v1550 = vpop.f32.mrf.mxu0
          %v1551 = vadd.f32 %v1502, %v1550
          %v1552 = vpop.f32.mrf.mxu0
          %v1553 = vadd.f32 %v1504, %v1552
          %1554 = vmatmul.bf16.gmra.mxu0 %v899
          %v1555 = vpop.f32.mrf.mxu0
          %v1556 = vadd.f32 %v1507, %v1555
          %v1557 = vpop.f32.mrf.mxu0
          %v1558 = vadd.f32 %v1509, %v1557
          %1559 = vmatmul.bf16.gmra.mxu0 %v907
          %v1560 = vpop.f32.mrf.mxu0
          %v1561 = vadd.f32 %v1512, %v1560
          %v1562 = vpop.f32.mrf.mxu0
          %v1563 = vadd.f32 %v1514, %v1562
          %1564 = vmatmul.bf16.gmra.mxu0 %v915
          %v1565 = vpop.f32.mrf.mxu0
          %v1566 = vadd.f32 %v1517, %v1565
          %v1567 = vpop.f32.mrf.mxu0
          %v1568 = vadd.f32 %v1519, %v1567
          %1569 = vmatmul.bf16.gmra.mxu0 %v923
          %v1570 = vpop.f32.mrf.mxu0
          %v1571 = vadd.f32 %v1522, %v1570
          %v1572 = vpop.f32.mrf.mxu0
          %v1573 = vadd.f32 %v1524, %v1572
          %1574 = vmatmul.bf16.gmra.mxu0 %v931
          %v1575 = vpop.f32.mrf.mxu0
          %v1576 = vadd.f32 %v1527, %v1575
          %v1577 = vpop.f32.mrf.mxu0
          %v1578 = vadd.f32 %v1529, %v1577
          %1579 = vdwg.mxu0
          %1580 = vmatpush.bf16.msra.mxu0 %v1295
          %1581 = vmatpush.bf16.msra.mxu0 %v1294
          %1582 = vmatpush.bf16.msra.mxu0 %v1293
          %1583 = vmatpush.bf16.msra.mxu0 %v1292
          %1584 = vmatpush.bf16.msra.mxu0 %v1291
          %1585 = vmatpush.bf16.msra.mxu0 %v1290
          %1586 = vmatpush.bf16.msra.mxu0 %v1289
          %1587 = vmatpush.bf16.msra.mxu0 %v1288
          %1588 = vmatmul.bf16.gmra.mxu0 %v876
          %v1589 = vpop.f32.mrf.mxu0
          %v1590 = vadd.f32 %v1541, %v1589
          %v1591 = vpop.f32.mrf.mxu0
          %v1592 = vadd.f32 %v1543, %v1591
          %1593 = vmatmul.bf16.gmra.mxu0 %v884
          %v1594 = vpop.f32.mrf.mxu0
          %v1595 = vadd.f32 %v1546, %v1594
          %v1596 = vpop.f32.mrf.mxu0
          %v1597 = vadd.f32 %v1548, %v1596
          %1598 = vmatmul.bf16.gmra.mxu0 %v892
          %v1599 = vpop.f32.mrf.mxu0
          %v1600 = vadd.f32 %v1551, %v1599
          %v1601 = vpop.f32.mrf.mxu0
          %v1602 = vadd.f32 %v1553, %v1601
          %1603 = vmatmul.bf16.gmra.mxu0 %v900
          %v1604 = vpop.f32.mrf.mxu0
          %v1605 = vadd.f32 %v1556, %v1604
          %v1606 = vpop.f32.mrf.mxu0
          %v1607 = vadd.f32 %v1558, %v1606
          %1608 = vmatmul.bf16.gmra.mxu0 %v908
          %v1609 = vpop.f32.mrf.mxu0
          %v1610 = vadd.f32 %v1561, %v1609
          %v1611 = vpop.f32.mrf.mxu0
          %v1612 = vadd.f32 %v1563, %v1611
          %1613 = vmatmul.bf16.gmra.mxu0 %v916
          %v1614 = vpop.f32.mrf.mxu0
          %v1615 = vadd.f32 %v1566, %v1614
          %v1616 = vpop.f32.mrf.mxu0
          %v1617 = vadd.f32 %v1568, %v1616
          %1618 = vmatmul.bf16.gmra.mxu0 %v924
          %v1619 = vpop.f32.mrf.mxu0
          %v1620 = vadd.f32 %v1571, %v1619
          %v1621 = vpop.f32.mrf.mxu0
          %v1622 = vadd.f32 %v1573, %v1621
          %1623 = vmatmul.bf16.gmra.mxu0 %v932
          %v1624 = vpop.f32.mrf.mxu0
          %v1625 = vadd.f32 %v1576, %v1624
          %v1626 = vpop.f32.mrf.mxu0
          %v1627 = vadd.f32 %v1578, %v1626
          %1628 = vdwg.mxu0
          %1629 = vmatpush.bf16.msra.mxu0 %v1303
          %1630 = vmatpush.bf16.msra.mxu0 %v1302
          %1631 = vmatpush.bf16.msra.mxu0 %v1301
          %1632 = vmatpush.bf16.msra.mxu0 %v1300
          %1633 = vmatpush.bf16.msra.mxu0 %v1299
          %1634 = vmatpush.bf16.msra.mxu0 %v1298
          %1635 = vmatpush.bf16.msra.mxu0 %v1297
          %1636 = vmatpush.bf16.msra.mxu0 %v1296
          %1637 = vmatmul.bf16.gmra.mxu0 %v877
          %v1638 = vpop.f32.mrf.mxu0
          %v1639 = vadd.f32 %v1590, %v1638
          %v1640 = vpop.f32.mrf.mxu0
          %v1641 = vadd.f32 %v1592, %v1640
          %1642 = vmatmul.bf16.gmra.mxu0 %v885
          %v1643 = vpop.f32.mrf.mxu0
          %v1644 = vadd.f32 %v1595, %v1643
          %v1645 = vpop.f32.mrf.mxu0
          %v1646 = vadd.f32 %v1597, %v1645
          %1647 = vmatmul.bf16.gmra.mxu0 %v893
          %v1648 = vpop.f32.mrf.mxu0
          %v1649 = vadd.f32 %v1600, %v1648
          %v1650 = vpop.f32.mrf.mxu0
          %v1651 = vadd.f32 %v1602, %v1650
          %1652 = vmatmul.bf16.gmra.mxu0 %v901
          %v1653 = vpop.f32.mrf.mxu0
          %v1654 = vadd.f32 %v1605, %v1653
          %v1655 = vpop.f32.mrf.mxu0
          %v1656 = vadd.f32 %v1607, %v1655
          %1657 = vmatmul.bf16.gmra.mxu0 %v909
          %v1658 = vpop.f32.mrf.mxu0
          %v1659 = vadd.f32 %v1610, %v1658
          %v1660 = vpop.f32.mrf.mxu0
          %v1661 = vadd.f32 %v1612, %v1660
          %1662 = vmatmul.bf16.gmra.mxu0 %v917
          %v1663 = vpop.f32.mrf.mxu0
          %v1664 = vadd.f32 %v1615, %v1663
          %v1665 = vpop.f32.mrf.mxu0
          %v1666 = vadd.f32 %v1617, %v1665
          %1667 = vmatmul.bf16.gmra.mxu0 %v925
          %v1668 = vpop.f32.mrf.mxu0
          %v1669 = vadd.f32 %v1620, %v1668
          %v1670 = vpop.f32.mrf.mxu0
          %v1671 = vadd.f32 %v1622, %v1670
          %1672 = vmatmul.bf16.gmra.mxu0 %v933
          %v1673 = vpop.f32.mrf.mxu0
          %v1674 = vadd.f32 %v1625, %v1673
          %v1675 = vpop.f32.mrf.mxu0
          %v1676 = vadd.f32 %v1627, %v1675
          %1677 = vdwg.mxu0
          %1678 = vmatpush.bf16.msra.mxu0 %v1311
          %1679 = vmatpush.bf16.msra.mxu0 %v1310
          %1680 = vmatpush.bf16.msra.mxu0 %v1309
          %1681 = vmatpush.bf16.msra.mxu0 %v1308
          %1682 = vmatpush.bf16.msra.mxu0 %v1307
          %1683 = vmatpush.bf16.msra.mxu0 %v1306
          %1684 = vmatpush.bf16.msra.mxu0 %v1305
          %1685 = vmatpush.bf16.msra.mxu0 %v1304
          %1686 = vmatmul.bf16.gmra.mxu0 %v878
          %v1687 = vpop.f32.mrf.mxu0
          %v1688 = vadd.f32 %v1639, %v1687
          %v1689 = vpop.f32.mrf.mxu0
          %v1690 = vadd.f32 %v1641, %v1689
          %1691 = vmatmul.bf16.gmra.mxu0 %v886
          %v1692 = vpop.f32.mrf.mxu0
          %v1693 = vadd.f32 %v1644, %v1692
          %v1694 = vpop.f32.mrf.mxu0
          %v1695 = vadd.f32 %v1646, %v1694
          %1696 = vmatmul.bf16.gmra.mxu0 %v894
          %v1697 = vpop.f32.mrf.mxu0
          %v1698 = vadd.f32 %v1649, %v1697
          %v1699 = vpop.f32.mrf.mxu0
          %v1700 = vadd.f32 %v1651, %v1699
          %1701 = vmatmul.bf16.gmra.mxu0 %v902
          %v1702 = vpop.f32.mrf.mxu0
          %v1703 = vadd.f32 %v1654, %v1702
          %v1704 = vpop.f32.mrf.mxu0
          %v1705 = vadd.f32 %v1656, %v1704
          %1706 = vmatmul.bf16.gmra.mxu0 %v910
          %v1707 = vpop.f32.mrf.mxu0
          %v1708 = vadd.f32 %v1659, %v1707
          %v1709 = vpop.f32.mrf.mxu0
          %v1710 = vadd.f32 %v1661, %v1709
          %1711 = vmatmul.bf16.gmra.mxu0 %v918
          %v1712 = vpop.f32.mrf.mxu0
          %v1713 = vadd.f32 %v1664, %v1712
          %v1714 = vpop.f32.mrf.mxu0
          %v1715 = vadd.f32 %v1666, %v1714
          %1716 = vmatmul.bf16.gmra.mxu0 %v926
          %v1717 = vpop.f32.mrf.mxu0
          %v1718 = vadd.f32 %v1669, %v1717
          %v1719 = vpop.f32.mrf.mxu0
          %v1720 = vadd.f32 %v1671, %v1719
          %1721 = vmatmul.bf16.gmra.mxu0 %v934
          %v1722 = vpop.f32.mrf.mxu0
          %v1723 = vadd.f32 %v1674, %v1722
          %v1724 = vpop.f32.mrf.mxu0
          %v1725 = vadd.f32 %v1676, %v1724
          %1726 = vdwg.mxu0
          %1727 = vmatpush.bf16.msra.mxu0 %v1319
          %1728 = vmatpush.bf16.msra.mxu0 %v1318
          %1729 = vmatpush.bf16.msra.mxu0 %v1317
          %1730 = vmatpush.bf16.msra.mxu0 %v1316
          %1731 = vmatpush.bf16.msra.mxu0 %v1315
          %1732 = vmatpush.bf16.msra.mxu0 %v1314
          %1733 = vmatpush.bf16.msra.mxu0 %v1313
          %1734 = vmatpush.bf16.msra.mxu0 %v1312
          %1735 = vmatmul.bf16.gmra.mxu0 %v879
          %v1736 = vpop.f32.mrf.mxu0
          %v1737 = vadd.f32 %v1688, %v1736
          %v1738 = vpop.f32.mrf.mxu0
          %v1739 = vadd.f32 %v1690, %v1738
          %1740 = vmatmul.bf16.gmra.mxu0 %v887
          %v1741 = vpop.f32.mrf.mxu0
          %v1742 = vadd.f32 %v1693, %v1741
          %v1743 = vpop.f32.mrf.mxu0
          %v1744 = vadd.f32 %v1695, %v1743
          %1745 = vmatmul.bf16.gmra.mxu0 %v895
          %v1746 = vpop.f32.mrf.mxu0
          %v1747 = vadd.f32 %v1698, %v1746
          %v1748 = vpop.f32.mrf.mxu0
          %v1749 = vadd.f32 %v1700, %v1748
          %1750 = vmatmul.bf16.gmra.mxu0 %v903
          %v1751 = vpop.f32.mrf.mxu0
          %v1752 = vadd.f32 %v1703, %v1751
          %v1753 = vpop.f32.mrf.mxu0
          %v1754 = vadd.f32 %v1705, %v1753
          %1755 = vmatmul.bf16.gmra.mxu0 %v911
          %v1756 = vpop.f32.mrf.mxu0
          %v1757 = vadd.f32 %v1708, %v1756
          %v1758 = vpop.f32.mrf.mxu0
          %v1759 = vadd.f32 %v1710, %v1758
          %1760 = vmatmul.bf16.gmra.mxu0 %v919
          %v1761 = vpop.f32.mrf.mxu0
          %v1762 = vadd.f32 %v1713, %v1761
          %v1763 = vpop.f32.mrf.mxu0
          %v1764 = vadd.f32 %v1715, %v1763
          %1765 = vmatmul.bf16.gmra.mxu0 %v927
          %v1766 = vpop.f32.mrf.mxu0
          %v1767 = vadd.f32 %v1718, %v1766
          %v1768 = vpop.f32.mrf.mxu0
          %v1769 = vadd.f32 %v1720, %v1768
          %1770 = vmatmul.bf16.gmra.mxu0 %v935
          %v1771 = vpop.f32.mrf.mxu0
          %v1772 = vadd.f32 %v1723, %v1771
          %v1773 = vpop.f32.mrf.mxu0
          %v1774 = vadd.f32 %v1725, %v1773
          %1775 = vdwg.mxu0
          %v1776 = vpack.c.bf16 %v1739, %v1737
          %v1777 = vpack.c.bf16 %v1744, %v1742
          %v1778 = vpack.c.bf16 %v1749, %v1747
          %v1779 = vpack.c.bf16 %v1754, %v1752
          %v1780 = vpack.c.bf16 %v1759, %v1757
          %v1781 = vpack.c.bf16 %v1764, %v1762
          %v1782 = vpack.c.bf16 %v1769, %v1767
          %v1783 = vpack.c.bf16 %v1774, %v1772
          %v1784 = vld [vmem:[#allocation11] sm:$0xf]
          %v1785 = vld [vmem:[#allocation11 + $0x4] sm:$0xf]
          %v1786 = vld [vmem:[#allocation11 + $0x8] sm:$0xf]
          %v1787 = vld [vmem:[#allocation11 + $0xc] sm:$0xf]
          %v1788 = vld [vmem:[#allocation11 + $0x10] sm:$0xf]
          %v1789 = vld [vmem:[#allocation11 + $0x14] sm:$0xf]
          %v1790 = vld [vmem:[#allocation11 + $0x18] sm:$0xf]
          %v1791 = vld [vmem:[#allocation11 + $0x1c] sm:$0xf]
          %v1792 = vld [vmem:[#allocation11 + $0x20] sm:$0xf]
          %v1793 = vld [vmem:[#allocation11 + $0x24] sm:$0xf]
          %v1794 = vld [vmem:[#allocation11 + $0x28] sm:$0xf]
          %v1795 = vld [vmem:[#allocation11 + $0x2c] sm:$0xf]
          %v1796 = vld [vmem:[#allocation11 + $0x30] sm:$0xf]
          %v1797 = vld [vmem:[#allocation11 + $0x34] sm:$0xf]
          %v1798 = vld [vmem:[#allocation11 + $0x38] sm:$0xf]
          %v1799 = vld [vmem:[#allocation11 + $0x3c] sm:$0xf]
          %v1816 = vunpack.c.l.b16 %v1784
          %v1817 = vunpack.c.l.b16 %v1785
          %v1818 = vunpack.c.l.b16 %v1786
          %v1819 = vunpack.c.l.b16 %v1787
          %v1820 = vunpack.c.l.b16 %v1788
          %v1821 = vunpack.c.l.b16 %v1789
          %v1822 = vunpack.c.l.b16 %v1790
          %v1823 = vunpack.c.l.b16 %v1791
          %v1824 = vunpack.c.l.b16 %v1792
          %v1825 = vunpack.c.l.b16 %v1793
          %v1826 = vunpack.c.l.b16 %v1794
          %v1827 = vunpack.c.l.b16 %v1795
          %v1828 = vunpack.c.l.b16 %v1796
          %v1829 = vunpack.c.l.b16 %v1797
          %v1830 = vunpack.c.l.b16 %v1798
          %v1831 = vunpack.c.l.b16 %v1799
          %v1832 = vpack.c.b16 %v1817, %v1816
          %v1833 = vpack.c.b16 %v1819, %v1818
          %v1834 = vpack.c.b16 %v1821, %v1820
          %v1835 = vpack.c.b16 %v1823, %v1822
          %v1836 = vpack.c.b16 %v1825, %v1824
          %v1837 = vpack.c.b16 %v1827, %v1826
          %v1838 = vpack.c.b16 %v1829, %v1828
          %v1839 = vpack.c.b16 %v1831, %v1830
          %1848 = vmatpush.bf16.msra.mxu0 %v1839
          %1849 = vmatpush.bf16.msra.mxu0 %v1838
          %1850 = vmatpush.bf16.msra.mxu0 %v1837
          %1851 = vmatpush.bf16.msra.mxu0 %v1836
          %1852 = vmatpush.bf16.msra.mxu0 %v1835
          %1853 = vmatpush.bf16.msra.mxu0 %v1834
          %1854 = vmatpush.bf16.msra.mxu0 %v1833
          %1855 = vmatpush.bf16.msra.mxu0 %v1832
          %1856 = vmatmul.bf16.gmra.mxu0 %v1776
          %v1857 = vpop.f32.mrf.mxu0
          %v1858 = vadd.f32 0.0, %v1857
          %v1859 = vpop.f32.mrf.mxu0
          %v1860 = vadd.f32 0.0, %v1859
          %1861 = vmatmul.bf16.gmra.mxu0 %v1777
          %v1862 = vpop.f32.mrf.mxu0
          %v1863 = vadd.f32 0.0, %v1862
          %v1864 = vpop.f32.mrf.mxu0
          %v1865 = vadd.f32 0.0, %v1864
          %1866 = vmatmul.bf16.gmra.mxu0 %v1778
          %v1867 = vpop.f32.mrf.mxu0
          %v1868 = vadd.f32 0.0, %v1867
          %v1869 = vpop.f32.mrf.mxu0
          %v1870 = vadd.f32 0.0, %v1869
          %1871 = vmatmul.bf16.gmra.mxu0 %v1779
          %v1872 = vpop.f32.mrf.mxu0
          %v1873 = vadd.f32 0.0, %v1872
          %v1874 = vpop.f32.mrf.mxu0
          %v1875 = vadd.f32 0.0, %v1874
          %1876 = vmatmul.bf16.gmra.mxu0 %v1780
          %v1877 = vpop.f32.mrf.mxu0
          %v1878 = vadd.f32 0.0, %v1877
          %v1879 = vpop.f32.mrf.mxu0
          %v1880 = vadd.f32 0.0, %v1879
          %1881 = vmatmul.bf16.gmra.mxu0 %v1781
          %v1882 = vpop.f32.mrf.mxu0
          %v1883 = vadd.f32 0.0, %v1882
          %v1884 = vpop.f32.mrf.mxu0
          %v1885 = vadd.f32 0.0, %v1884
          %1886 = vmatmul.bf16.gmra.mxu0 %v1782
          %v1887 = vpop.f32.mrf.mxu0
          %v1888 = vadd.f32 0.0, %v1887
          %v1889 = vpop.f32.mrf.mxu0
          %v1890 = vadd.f32 0.0, %v1889
          %1891 = vmatmul.bf16.gmra.mxu0 %v1783
          %v1892 = vpop.f32.mrf.mxu0
          %v1893 = vadd.f32 0.0, %v1892
          %v1894 = vpop.f32.mrf.mxu0
          %v1895 = vadd.f32 0.0, %v1894
          %1896 = vdwg.mxu0
          %v1897 = vmax.f32 %v1858, 0.0
          %v1898 = vmax.f32 %v1860, 0.0
          %v1899 = vmax.f32 %v1863, 0.0
          %v1900 = vmax.f32 %v1865, 0.0
          %v1901 = vmax.f32 %v1868, 0.0
          %v1902 = vmax.f32 %v1870, 0.0
          %v1903 = vmax.f32 %v1873, 0.0
          %v1904 = vmax.f32 %v1875, 0.0
          %v1905 = vmax.f32 %v1878, 0.0
          %v1906 = vmax.f32 %v1880, 0.0
          %v1907 = vmax.f32 %v1883, 0.0
          %v1908 = vmax.f32 %v1885, 0.0
          %v1909 = vmax.f32 %v1888, 0.0
          %v1910 = vmax.f32 %v1890, 0.0
          %v1911 = vmax.f32 %v1893, 0.0
          %v1912 = vmax.f32 %v1895, 0.0
          %v1913 = vpack.c.bf16 %v1898, %v1897
          %v1914 = vpack.c.bf16 %v1900, %v1899
          %v1915 = vpack.c.bf16 %v1902, %v1901
          %v1916 = vpack.c.bf16 %v1904, %v1903
          %v1917 = vpack.c.bf16 %v1906, %v1905
          %v1918 = vpack.c.bf16 %v1908, %v1907
          %v1919 = vpack.c.bf16 %v1910, %v1909
          %v1920 = vpack.c.bf16 %v1912, %v1911
          %v1921 = vld [vmem:[#allocation13] sm:$0xf]
          %v1922 = vld [vmem:[#allocation13 + $0x4] sm:$0xf]
          %v1923 = vld [vmem:[#allocation13 + $0x8] sm:$0xf]
          %v1924 = vld [vmem:[#allocation13 + $0xc] sm:$0xf]
          %v1925 = vld [vmem:[#allocation13 + $0x10] sm:$0xf]
          %v1926 = vld [vmem:[#allocation13 + $0x14] sm:$0xf]
          %v1927 = vld [vmem:[#allocation13 + $0x18] sm:$0xf]
          %v1928 = vld [vmem:[#allocation13 + $0x1c] sm:$0xf]
          %v1929 = vld [vmem:[#allocation13 + $0x20] sm:$0xf]
          %v1930 = vld [vmem:[#allocation13 + $0x24] sm:$0xf]
          %v1931 = vld [vmem:[#allocation13 + $0x28] sm:$0xf]
          %v1932 = vld [vmem:[#allocation13 + $0x2c] sm:$0xf]
          %v1933 = vld [vmem:[#allocation13 + $0x30] sm:$0xf]
          %v1934 = vld [vmem:[#allocation13 + $0x34] sm:$0xf]
          %v1935 = vld [vmem:[#allocation13 + $0x38] sm:$0xf]
          %v1936 = vld [vmem:[#allocation13 + $0x3c] sm:$0xf]
          %v1953 = vunpack.c.l.b16 %v1921
          %v1954 = vunpack.c.l.b16 %v1922
          %v1955 = vunpack.c.l.b16 %v1923
          %v1956 = vunpack.c.l.b16 %v1924
          %v1957 = vunpack.c.l.b16 %v1925
          %v1958 = vunpack.c.l.b16 %v1926
          %v1959 = vunpack.c.l.b16 %v1927
          %v1960 = vunpack.c.l.b16 %v1928
          %v1961 = vunpack.c.l.b16 %v1929
          %v1962 = vunpack.c.l.b16 %v1930
          %v1963 = vunpack.c.l.b16 %v1931
          %v1964 = vunpack.c.l.b16 %v1932
          %v1965 = vunpack.c.l.b16 %v1933
          %v1966 = vunpack.c.l.b16 %v1934
          %v1967 = vunpack.c.l.b16 %v1935
          %v1968 = vunpack.c.l.b16 %v1936
          %v1969 = vpack.c.b16 %v1954, %v1953
          %v1970 = vpack.c.b16 %v1956, %v1955
          %v1971 = vpack.c.b16 %v1958, %v1957
          %v1972 = vpack.c.b16 %v1960, %v1959
          %v1973 = vpack.c.b16 %v1962, %v1961
          %v1974 = vpack.c.b16 %v1964, %v1963
          %v1975 = vpack.c.b16 %v1966, %v1965
          %v1976 = vpack.c.b16 %v1968, %v1967
          %1985 = vmatpush.bf16.msra.mxu0 %v1976
          %1986 = vmatpush.bf16.msra.mxu0 %v1975
          %1987 = vmatpush.bf16.msra.mxu0 %v1974
          %1988 = vmatpush.bf16.msra.mxu0 %v1973
          %1989 = vmatpush.bf16.msra.mxu0 %v1972
          %1990 = vmatpush.bf16.msra.mxu0 %v1971
          %1991 = vmatpush.bf16.msra.mxu0 %v1970
          %1992 = vmatpush.bf16.msra.mxu0 %v1969
          %1993 = vmatmul.bf16.gmra.mxu0 %v1913
          %v1994 = vpop.f32.mrf.mxu0
          %v1995 = vadd.f32 0.0, %v1994
          %v1996 = vpop.f32.mrf.mxu0
          %v1997 = vadd.f32 0.0, %v1996
          %1998 = vmatmul.bf16.gmra.mxu0 %v1914
          %v1999 = vpop.f32.mrf.mxu0
          %v2000 = vadd.f32 0.0, %v1999
          %v2001 = vpop.f32.mrf.mxu0
          %v2002 = vadd.f32 0.0, %v2001
          %2003 = vmatmul.bf16.gmra.mxu0 %v1915
          %v2004 = vpop.f32.mrf.mxu0
          %v2005 = vadd.f32 0.0, %v2004
          %v2006 = vpop.f32.mrf.mxu0
          %v2007 = vadd.f32 0.0, %v2006
          %2008 = vmatmul.bf16.gmra.mxu0 %v1916
          %v2009 = vpop.f32.mrf.mxu0
          %v2010 = vadd.f32 0.0, %v2009
          %v2011 = vpop.f32.mrf.mxu0
          %v2012 = vadd.f32 0.0, %v2011
          %2013 = vmatmul.bf16.gmra.mxu0 %v1917
          %v2014 = vpop.f32.mrf.mxu0
          %v2015 = vadd.f32 0.0, %v2014
          %v2016 = vpop.f32.mrf.mxu0
          %v2017 = vadd.f32 0.0, %v2016
          %2018 = vmatmul.bf16.gmra.mxu0 %v1918
          %v2019 = vpop.f32.mrf.mxu0
          %v2020 = vadd.f32 0.0, %v2019
          %v2021 = vpop.f32.mrf.mxu0
          %v2022 = vadd.f32 0.0, %v2021
          %2023 = vmatmul.bf16.gmra.mxu0 %v1919
          %v2024 = vpop.f32.mrf.mxu0
          %v2025 = vadd.f32 0.0, %v2024
          %v2026 = vpop.f32.mrf.mxu0
          %v2027 = vadd.f32 0.0, %v2026
          %2028 = vmatmul.bf16.gmra.mxu0 %v1920
          %v2029 = vpop.f32.mrf.mxu0
          %v2030 = vadd.f32 0.0, %v2029
          %v2031 = vpop.f32.mrf.mxu0
          %v2032 = vadd.f32 0.0, %v2031
          %2033 = vdwg.mxu0
          %v2034 = vmul.f32 %v1995, %v1995
          %v2035 = vmul.f32 %v1997, %v1997
          %v2036 = vmul.f32 %v2000, %v2000
          %v2037 = vmul.f32 %v2002, %v2002
          %v2038 = vmul.f32 %v2005, %v2005
          %v2039 = vmul.f32 %v2007, %v2007
          %v2040 = vmul.f32 %v2010, %v2010
          %v2041 = vmul.f32 %v2012, %v2012
          %v2042 = vmul.f32 %v2015, %v2015
          %v2043 = vmul.f32 %v2017, %v2017
          %v2044 = vmul.f32 %v2020, %v2020
          %v2045 = vmul.f32 %v2022, %v2022
          %v2046 = vmul.f32 %v2025, %v2025
          %v2047 = vmul.f32 %v2027, %v2027
          %v2048 = vmul.f32 %v2030, %v2030
          %v2049 = vmul.f32 %v2032, %v2032
          %2050 = vadd.xlane.f32.xlu0 %v2034
          %v2051 = vpop.xlane.xlu0 %2050
          %2052 = vadd.xlane.f32.xlu0 %v2035
          %v2053 = vpop.xlane.xlu0 %2052
          %2054 = vadd.xlane.f32.xlu0 %v2036
          %v2055 = vpop.xlane.xlu0 %2054
          %2056 = vadd.xlane.f32.xlu0 %v2037
          %v2057 = vpop.xlane.xlu0 %2056
          %2058 = vadd.xlane.f32.xlu0 %v2038
          %v2059 = vpop.xlane.xlu0 %2058
          %2060 = vadd.xlane.f32.xlu0 %v2039
          %v2061 = vpop.xlane.xlu0 %2060
          %2062 = vadd.xlane.f32.xlu0 %v2040
          %v2063 = vpop.xlane.xlu0 %2062
          %2064 = vadd.xlane.f32.xlu0 %v2041
          %v2065 = vpop.xlane.xlu0 %2064
          %2066 = vadd.xlane.f32.xlu0 %v2042
          %v2067 = vpop.xlane.xlu0 %2066
          %2068 = vadd.xlane.f32.xlu0 %v2043
          %v2069 = vpop.xlane.xlu0 %2068
          %2070 = vadd.xlane.f32.xlu0 %v2044
          %v2071 = vpop.xlane.xlu0 %2070
          %2072 = vadd.xlane.f32.xlu0 %v2045
          %v2073 = vpop.xlane.xlu0 %2072
          %2074 = vadd.xlane.f32.xlu0 %v2046
          %v2075 = vpop.xlane.xlu0 %2074
          %2076 = vadd.xlane.f32.xlu0 %v2047
          %v2077 = vpop.xlane.xlu0 %2076
          %2078 = vadd.xlane.f32.xlu0 %v2048
          %v2079 = vpop.xlane.xlu0 %2078
          %2080 = vadd.xlane.f32.xlu0 %v2049
          %v2081 = vpop.xlane.xlu0 %2080
          %v2082 = vmax.f32 %v2051, 1e-24
          %v2083 = vmax.f32 %v2053, 1e-24
          %v2084 = vmax.f32 %v2055, 1e-24
          %v2085 = vmax.f32 %v2057, 1e-24
          %v2086 = vmax.f32 %v2059, 1e-24
          %v2087 = vmax.f32 %v2061, 1e-24
          %v2088 = vmax.f32 %v2063, 1e-24
          %v2089 = vmax.f32 %v2065, 1e-24
          %v2090 = vmax.f32 %v2067, 1e-24
          %v2091 = vmax.f32 %v2069, 1e-24
          %v2092 = vmax.f32 %v2071, 1e-24
          %v2093 = vmax.f32 %v2073, 1e-24
          %v2094 = vmax.f32 %v2075, 1e-24
          %v2095 = vmax.f32 %v2077, 1e-24
          %v2096 = vmax.f32 %v2079, 1e-24
          %v2097 = vmax.f32 %v2081, 1e-24
          %v2098 = vrsqrt.pop %v2082
          %v2099 = vmul.f32 %v2098, %v2082
          %v2100 = vmul.f32 %v2099, %v2098
          %v2101 = vmul.f32 0.5, %v2100
          %v2102 = vsub.f32 1.5, %v2101
          %v2103 = vmul.f32 %v2098, %v2102
          %vm2104 = vweird.f32 %v2082
          %vm2105 = vweird.f32 %v2098
          %vm2106 = vmor %vm2104, %vm2105
          %v2107 = vsel %vm2106, %v2098, %v2103
          %v2108 = vrsqrt.pop %v2083
          %v2109 = vmul.f32 %v2108, %v2083
          %v2110 = vmul.f32 %v2109, %v2108
          %v2111 = vmul.f32 0.5, %v2110
          %v2112 = vsub.f32 1.5, %v2111
          %v2113 = vmul.f32 %v2108, %v2112
          %vm2114 = vweird.f32 %v2083
          %vm2115 = vweird.f32 %v2108
          %vm2116 = vmor %vm2114, %vm2115
          %v2117 = vsel %vm2116, %v2108, %v2113
          %v2118 = vrsqrt.pop %v2084
          %v2119 = vmul.f32 %v2118, %v2084
          %v2120 = vmul.f32 %v2119, %v2118
          %v2121 = vmul.f32 0.5, %v2120
          %v2122 = vsub.f32 1.5, %v2121
          %v2123 = vmul.f32 %v2118, %v2122
          %vm2124 = vweird.f32 %v2084
          %vm2125 = vweird.f32 %v2118
          %vm2126 = vmor %vm2124, %vm2125
          %v2127 = vsel %vm2126, %v2118, %v2123
          %v2128 = vrsqrt.pop %v2085
          %v2129 = vmul.f32 %v2128, %v2085
          %v2130 = vmul.f32 %v2129, %v2128
          %v2131 = vmul.f32 0.5, %v2130
          %v2132 = vsub.f32 1.5, %v2131
          %v2133 = vmul.f32 %v2128, %v2132
          %vm2134 = vweird.f32 %v2085
          %vm2135 = vweird.f32 %v2128
          %vm2136 = vmor %vm2134, %vm2135
          %v2137 = vsel %vm2136, %v2128, %v2133
          %v2138 = vrsqrt.pop %v2086
          %v2139 = vmul.f32 %v2138, %v2086
          %v2140 = vmul.f32 %v2139, %v2138
          %v2141 = vmul.f32 0.5, %v2140
          %v2142 = vsub.f32 1.5, %v2141
          %v2143 = vmul.f32 %v2138, %v2142
          %vm2144 = vweird.f32 %v2086
          %vm2145 = vweird.f32 %v2138
          %vm2146 = vmor %vm2144, %vm2145
          %v2147 = vsel %vm2146, %v2138, %v2143
          %v2148 = vrsqrt.pop %v2087
          %v2149 = vmul.f32 %v2148, %v2087
          %v2150 = vmul.f32 %v2149, %v2148
          %v2151 = vmul.f32 0.5, %v2150
          %v2152 = vsub.f32 1.5, %v2151
          %v2153 = vmul.f32 %v2148, %v2152
          %vm2154 = vweird.f32 %v2087
          %vm2155 = vweird.f32 %v2148
          %vm2156 = vmor %vm2154, %vm2155
          %v2157 = vsel %vm2156, %v2148, %v2153
          %v2158 = vrsqrt.pop %v2088
          %v2159 = vmul.f32 %v2158, %v2088
          %v2160 = vmul.f32 %v2159, %v2158
          %v2161 = vmul.f32 0.5, %v2160
          %v2162 = vsub.f32 1.5, %v2161
          %v2163 = vmul.f32 %v2158, %v2162
          %vm2164 = vweird.f32 %v2088
          %vm2165 = vweird.f32 %v2158
          %vm2166 = vmor %vm2164, %vm2165
          %v2167 = vsel %vm2166, %v2158, %v2163
          %v2168 = vrsqrt.pop %v2089
          %v2169 = vmul.f32 %v2168, %v2089
          %v2170 = vmul.f32 %v2169, %v2168
          %v2171 = vmul.f32 0.5, %v2170
          %v2172 = vsub.f32 1.5, %v2171
          %v2173 = vmul.f32 %v2168, %v2172
          %vm2174 = vweird.f32 %v2089
          %vm2175 = vweird.f32 %v2168
          %vm2176 = vmor %vm2174, %vm2175
          %v2177 = vsel %vm2176, %v2168, %v2173
          %v2178 = vrsqrt.pop %v2090
          %v2179 = vmul.f32 %v2178, %v2090
          %v2180 = vmul.f32 %v2179, %v2178
          %v2181 = vmul.f32 0.5, %v2180
          %v2182 = vsub.f32 1.5, %v2181
          %v2183 = vmul.f32 %v2178, %v2182
          %vm2184 = vweird.f32 %v2090
          %vm2185 = vweird.f32 %v2178
          %vm2186 = vmor %vm2184, %vm2185
          %v2187 = vsel %vm2186, %v2178, %v2183
          %v2188 = vrsqrt.pop %v2091
          %v2189 = vmul.f32 %v2188, %v2091
          %v2190 = vmul.f32 %v2189, %v2188
          %v2191 = vmul.f32 0.5, %v2190
          %v2192 = vsub.f32 1.5, %v2191
          %v2193 = vmul.f32 %v2188, %v2192
          %vm2194 = vweird.f32 %v2091
          %vm2195 = vweird.f32 %v2188
          %vm2196 = vmor %vm2194, %vm2195
          %v2197 = vsel %vm2196, %v2188, %v2193
          %v2198 = vrsqrt.pop %v2092
          %v2199 = vmul.f32 %v2198, %v2092
          %v2200 = vmul.f32 %v2199, %v2198
          %v2201 = vmul.f32 0.5, %v2200
          %v2202 = vsub.f32 1.5, %v2201
          %v2203 = vmul.f32 %v2198, %v2202
          %vm2204 = vweird.f32 %v2092
          %vm2205 = vweird.f32 %v2198
          %vm2206 = vmor %vm2204, %vm2205
          %v2207 = vsel %vm2206, %v2198, %v2203
          %v2208 = vrsqrt.pop %v2093
          %v2209 = vmul.f32 %v2208, %v2093
          %v2210 = vmul.f32 %v2209, %v2208
          %v2211 = vmul.f32 0.5, %v2210
          %v2212 = vsub.f32 1.5, %v2211
          %v2213 = vmul.f32 %v2208, %v2212
          %vm2214 = vweird.f32 %v2093
          %vm2215 = vweird.f32 %v2208
          %vm2216 = vmor %vm2214, %vm2215
          %v2217 = vsel %vm2216, %v2208, %v2213
          %v2218 = vrsqrt.pop %v2094
          %v2219 = vmul.f32 %v2218, %v2094
          %v2220 = vmul.f32 %v2219, %v2218
          %v2221 = vmul.f32 0.5, %v2220
          %v2222 = vsub.f32 1.5, %v2221
          %v2223 = vmul.f32 %v2218, %v2222
          %vm2224 = vweird.f32 %v2094
          %vm2225 = vweird.f32 %v2218
          %vm2226 = vmor %vm2224, %vm2225
          %v2227 = vsel %vm2226, %v2218, %v2223
          %v2228 = vrsqrt.pop %v2095
          %v2229 = vmul.f32 %v2228, %v2095
          %v2230 = vmul.f32 %v2229, %v2228
          %v2231 = vmul.f32 0.5, %v2230
          %v2232 = vsub.f32 1.5, %v2231
          %v2233 = vmul.f32 %v2228, %v2232
          %vm2234 = vweird.f32 %v2095
          %vm2235 = vweird.f32 %v2228
          %vm2236 = vmor %vm2234, %vm2235
          %v2237 = vsel %vm2236, %v2228, %v2233
          %v2238 = vrsqrt.pop %v2096
          %v2239 = vmul.f32 %v2238, %v2096
          %v2240 = vmul.f32 %v2239, %v2238
          %v2241 = vmul.f32 0.5, %v2240
          %v2242 = vsub.f32 1.5, %v2241
          %v2243 = vmul.f32 %v2238, %v2242
          %vm2244 = vweird.f32 %v2096
          %vm2245 = vweird.f32 %v2238
          %vm2246 = vmor %vm2244, %vm2245
          %v2247 = vsel %vm2246, %v2238, %v2243
          %v2248 = vrsqrt.pop %v2097
          %v2249 = vmul.f32 %v2248, %v2097
          %v2250 = vmul.f32 %v2249, %v2248
          %v2251 = vmul.f32 0.5, %v2250
          %v2252 = vsub.f32 1.5, %v2251
          %v2253 = vmul.f32 %v2248, %v2252
          %vm2254 = vweird.f32 %v2097
          %vm2255 = vweird.f32 %v2248
          %vm2256 = vmor %vm2254, %vm2255
          %v2257 = vsel %vm2256, %v2248, %v2253
          %v2258 = vmul.f32 %v1995, %v2107
          %v2259 = vmul.f32 %v1997, %v2117
          %v2260 = vmul.f32 %v2000, %v2127
          %v2261 = vmul.f32 %v2002, %v2137
          %v2262 = vmul.f32 %v2005, %v2147
          %v2263 = vmul.f32 %v2007, %v2157
          %v2264 = vmul.f32 %v2010, %v2167
          %v2265 = vmul.f32 %v2012, %v2177
          %v2266 = vmul.f32 %v2015, %v2187
          %v2267 = vmul.f32 %v2017, %v2197
          %v2268 = vmul.f32 %v2020, %v2207
          %v2269 = vmul.f32 %v2022, %v2217
          %v2270 = vmul.f32 %v2025, %v2227
          %v2271 = vmul.f32 %v2027, %v2237
          %v2272 = vmul.f32 %v2030, %v2247
          %v2273 = vmul.f32 %v2032, %v2257
          %v2274 = vpack.c.bf16 %v2258, %v2258
          %v2275 = vpack.c.bf16 %v2259, %v2259
          %v2276 = vpack.c.bf16 %v2260, %v2260
          %v2277 = vpack.c.bf16 %v2261, %v2261
          %v2278 = vpack.c.bf16 %v2262, %v2262
          %v2279 = vpack.c.bf16 %v2263, %v2263
          %v2280 = vpack.c.bf16 %v2264, %v2264
          %v2281 = vpack.c.bf16 %v2265, %v2265
          %v2282 = vpack.c.bf16 %v2266, %v2266
          %v2283 = vpack.c.bf16 %v2267, %v2267
          %v2284 = vpack.c.bf16 %v2268, %v2268
          %v2285 = vpack.c.bf16 %v2269, %v2269
          %v2286 = vpack.c.bf16 %v2270, %v2270
          %v2287 = vpack.c.bf16 %v2271, %v2271
          %v2288 = vpack.c.bf16 %v2272, %v2272
          %v2289 = vpack.c.bf16 %v2273, %v2273
          %2290 = vst [vmem:[#allocation2] sm:$0xf] %v2274
          %2291 = vst [vmem:[#allocation2 + $0x4] sm:$0xf] %v2275
          %2292 = vst [vmem:[#allocation2 + $0x8] sm:$0xf] %v2276
          %2293 = vst [vmem:[#allocation2 + $0xc] sm:$0xf] %v2277
          %2294 = vst [vmem:[#allocation2 + $0x10] sm:$0xf] %v2278
          %2295 = vst [vmem:[#allocation2 + $0x14] sm:$0xf] %v2279
          %2296 = vst [vmem:[#allocation2 + $0x18] sm:$0xf] %v2280
          %2297 = vst [vmem:[#allocation2 + $0x1c] sm:$0xf] %v2281
          %2298 = vst [vmem:[#allocation2 + $0x20] sm:$0xf] %v2282
          %2299 = vst [vmem:[#allocation2 + $0x24] sm:$0xf] %v2283
          %2300 = vst [vmem:[#allocation2 + $0x28] sm:$0xf] %v2284
          %2301 = vst [vmem:[#allocation2 + $0x2c] sm:$0xf] %v2285
          %2302 = vst [vmem:[#allocation2 + $0x30] sm:$0xf] %v2286
          %2303 = vst [vmem:[#allocation2 + $0x34] sm:$0xf] %v2287
          %2304 = vst [vmem:[#allocation2 + $0x38] sm:$0xf] %v2288
          %2305 = vst [vmem:[#allocation2 + $0x3c] sm:$0xf] %v2289
        $region88: #{tpu_custom_call.1} parent=51 // pred_fallthru
          _
        %v2306 = vld [vmem:[%s414] sm:$0xf]
        %v2307 = vld [vmem:[%s414 + $0x4] sm:$0xf]
        %v2308 = vld [vmem:[%s414 + $0x8] sm:$0xf]
        %v2309 = vld [vmem:[%s414 + $0xc] sm:$0xf]
        %v2310 = vld [vmem:[%s414 + $0x10] sm:$0xf]
        %v2311 = vld [vmem:[%s414 + $0x14] sm:$0xf]
        %v2312 = vld [vmem:[%s414 + $0x18] sm:$0xf]
        %v2313 = vld [vmem:[%s414 + $0x1c] sm:$0xf]
        %v2314 = vld [vmem:[%s414 + $0x20] sm:$0xf]
        %v2315 = vld [vmem:[%s414 + $0x24] sm:$0xf]
        %v2316 = vld [vmem:[%s414 + $0x28] sm:$0xf]
        %v2317 = vld [vmem:[%s414 + $0x2c] sm:$0xf]
        %v2318 = vld [vmem:[%s414 + $0x30] sm:$0xf]
        %v2319 = vld [vmem:[%s414 + $0x34] sm:$0xf]
        %v2320 = vld [vmem:[%s414 + $0x38] sm:$0xf]
        %v2321 = vld [vmem:[%s414 + $0x3c] sm:$0xf]
        %v2322 = vld [vmem:[#allocation14] sm:$0xf]
        %v2323 = vld [vmem:[#allocation14 + $0x4] sm:$0xf]
        %v2324 = vld [vmem:[#allocation14 + $0x8] sm:$0xf]
        %v2325 = vld [vmem:[#allocation14 + $0xc] sm:$0xf]
        %v2326 = vld [vmem:[#allocation14 + $0x10] sm:$0xf]
        %v2327 = vld [vmem:[#allocation14 + $0x14] sm:$0xf]
        %v2328 = vld [vmem:[#allocation14 + $0x18] sm:$0xf]
        %v2329 = vld [vmem:[#allocation14 + $0x1c] sm:$0xf]
        %v2330 = vld [vmem:[#allocation14 + $0x20] sm:$0xf]
        %v2331 = vld [vmem:[#allocation14 + $0x24] sm:$0xf]
        %v2332 = vld [vmem:[#allocation14 + $0x28] sm:$0xf]
        %v2333 = vld [vmem:[#allocation14 + $0x2c] sm:$0xf]
        %v2334 = vld [vmem:[#allocation14 + $0x30] sm:$0xf]
        %v2335 = vld [vmem:[#allocation14 + $0x34] sm:$0xf]
        %v2336 = vld [vmem:[#allocation14 + $0x38] sm:$0xf]
        %v2337 = vld [vmem:[#allocation14 + $0x3c] sm:$0xf]
        %v2354 = vunpack.c.l.b16 %v2306
        %v2355 = vunpack.c.l.b16 %v2307
        %v2356 = vunpack.c.l.b16 %v2308
        %v2357 = vunpack.c.l.b16 %v2309
        %v2358 = vunpack.c.l.b16 %v2310
        %v2359 = vunpack.c.l.b16 %v2311
        %v2360 = vunpack.c.l.b16 %v2312
        %v2361 = vunpack.c.l.b16 %v2313
        %v2362 = vunpack.c.l.b16 %v2314
        %v2363 = vunpack.c.l.b16 %v2315
        %v2364 = vunpack.c.l.b16 %v2316
        %v2365 = vunpack.c.l.b16 %v2317
        %v2366 = vunpack.c.l.b16 %v2318
        %v2367 = vunpack.c.l.b16 %v2319
        %v2368 = vunpack.c.l.b16 %v2320
        %v2369 = vunpack.c.l.b16 %v2321
        %v2370 = vpack.c.b16 %v2355, %v2354
        %v2371 = vpack.c.b16 %v2357, %v2356
        %v2372 = vpack.c.b16 %v2359, %v2358
        %v2373 = vpack.c.b16 %v2361, %v2360
        %v2374 = vpack.c.b16 %v2363, %v2362
        %v2375 = vpack.c.b16 %v2365, %v2364
        %v2376 = vpack.c.b16 %v2367, %v2366
        %v2377 = vpack.c.b16 %v2369, %v2368
        %v2402 = vunpack.c.l.b16 %v2322
        %v2403 = vunpack.c.l.b16 %v2323
        %v2404 = vunpack.c.l.b16 %v2324
        %v2405 = vunpack.c.l.b16 %v2325
        %v2406 = vunpack.c.l.b16 %v2326
        %v2407 = vunpack.c.l.b16 %v2327
        %v2408 = vunpack.c.l.b16 %v2328
        %v2409 = vunpack.c.l.b16 %v2329
        %v2410 = vunpack.c.l.b16 %v2330
        %v2411 = vunpack.c.l.b16 %v2331
        %v2412 = vunpack.c.l.b16 %v2332
        %v2413 = vunpack.c.l.b16 %v2333
        %v2414 = vunpack.c.l.b16 %v2334
        %v2415 = vunpack.c.l.b16 %v2335
        %v2416 = vunpack.c.l.b16 %v2336
        %v2417 = vunpack.c.l.b16 %v2337
        %v2418 = vpack.c.b16 %v2403, %v2402
        %v2419 = vpack.c.b16 %v2405, %v2404
        %v2420 = vpack.c.b16 %v2407, %v2406
        %v2421 = vpack.c.b16 %v2409, %v2408
        %v2422 = vpack.c.b16 %v2411, %v2410
        %v2423 = vpack.c.b16 %v2413, %v2412
        %v2424 = vpack.c.b16 %v2415, %v2414
        %v2425 = vpack.c.b16 %v2417, %v2416
        %2434 = vmatpush.bf16.msra.mxu0 %v2425
        %2435 = vmatpush.bf16.msra.mxu0 %v2424
        %2436 = vmatpush.bf16.msra.mxu0 %v2423
        %2437 = vmatpush.bf16.msra.mxu0 %v2422
        %2438 = vmatpush.bf16.msra.mxu0 %v2421
        %2439 = vmatpush.bf16.msra.mxu0 %v2420
        %2440 = vmatpush.bf16.msra.mxu0 %v2419
        %2441 = vmatpush.bf16.msra.mxu0 %v2418
        %2442 = vmatmul.bf16.gmra.mxu0 %v2370
        %v2443 = vpop.f32.mrf.mxu0
        %v2444 = vadd.f32 0.0, %v2443
        %v2445 = vpop.f32.mrf.mxu0
        %v2446 = vadd.f32 0.0, %v2445
        %2447 = vmatmul.bf16.gmra.mxu0 %v2371
        %v2448 = vpop.f32.mrf.mxu0
        %v2449 = vadd.f32 0.0, %v2448
        %v2450 = vpop.f32.mrf.mxu0
        %v2451 = vadd.f32 0.0, %v2450
        %2452 = vmatmul.bf16.gmra.mxu0 %v2372
        %v2453 = vpop.f32.mrf.mxu0
        %v2454 = vadd.f32 0.0, %v2453
        %v2455 = vpop.f32.mrf.mxu0
        %v2456 = vadd.f32 0.0, %v2455
        %2457 = vmatmul.bf16.gmra.mxu0 %v2373
        %v2458 = vpop.f32.mrf.mxu0
        %v2459 = vadd.f32 0.0, %v2458
        %v2460 = vpop.f32.mrf.mxu0
        %v2461 = vadd.f32 0.0, %v2460
        %2462 = vmatmul.bf16.gmra.mxu0 %v2374
        %v2463 = vpop.f32.mrf.mxu0
        %v2464 = vadd.f32 0.0, %v2463
        %v2465 = vpop.f32.mrf.mxu0
        %v2466 = vadd.f32 0.0, %v2465
        %2467 = vmatmul.bf16.gmra.mxu0 %v2375
        %v2468 = vpop.f32.mrf.mxu0
        %v2469 = vadd.f32 0.0, %v2468
        %v2470 = vpop.f32.mrf.mxu0
        %v2471 = vadd.f32 0.0, %v2470
        %2472 = vmatmul.bf16.gmra.mxu0 %v2376
        %v2473 = vpop.f32.mrf.mxu0
        %v2474 = vadd.f32 0.0, %v2473
        %v2475 = vpop.f32.mrf.mxu0
        %v2476 = vadd.f32 0.0, %v2475
        %2477 = vmatmul.bf16.gmra.mxu0 %v2377
        %v2478 = vpop.f32.mrf.mxu0
        %v2479 = vadd.f32 0.0, %v2478
        %v2480 = vpop.f32.mrf.mxu0
        %v2481 = vadd.f32 0.0, %v2480
        %2482 = vdwg.mxu0
        %v2483 = vmax.f32 %v2444, 0.0
        %v2484 = vmax.f32 %v2446, 0.0
        %v2485 = vmax.f32 %v2449, 0.0
        %v2486 = vmax.f32 %v2451, 0.0
        %v2487 = vmax.f32 %v2454, 0.0
        %v2488 = vmax.f32 %v2456, 0.0
        %v2489 = vmax.f32 %v2459, 0.0
        %v2490 = vmax.f32 %v2461, 0.0
        %v2491 = vmax.f32 %v2464, 0.0
        %v2492 = vmax.f32 %v2466, 0.0
        %v2493 = vmax.f32 %v2469, 0.0
        %v2494 = vmax.f32 %v2471, 0.0
        %v2495 = vmax.f32 %v2474, 0.0
        %v2496 = vmax.f32 %v2476, 0.0
        %v2497 = vmax.f32 %v2479, 0.0
        %v2498 = vmax.f32 %v2481, 0.0
        %v2499 = vpack.c.bf16 %v2484, %v2483
        %v2500 = vpack.c.bf16 %v2486, %v2485
        %v2501 = vpack.c.bf16 %v2488, %v2487
        %v2502 = vpack.c.bf16 %v2490, %v2489
        %v2503 = vpack.c.bf16 %v2492, %v2491
        %v2504 = vpack.c.bf16 %v2494, %v2493
        %v2505 = vpack.c.bf16 %v2496, %v2495
        %v2506 = vpack.c.bf16 %v2498, %v2497
        %v2507 = vld [vmem:[#allocation16] sm:$0xf]
        %v2508 = vld [vmem:[#allocation16 + $0x4] sm:$0xf]
        %v2509 = vld [vmem:[#allocation16 + $0x8] sm:$0xf]
        %v2510 = vld [vmem:[#allocation16 + $0xc] sm:$0xf]
        %v2511 = vld [vmem:[#allocation16 + $0x10] sm:$0xf]
        %v2512 = vld [vmem:[#allocation16 + $0x14] sm:$0xf]
        %v2513 = vld [vmem:[#allocation16 + $0x18] sm:$0xf]
        %v2514 = vld [vmem:[#allocation16 + $0x1c] sm:$0xf]
        %v2515 = vld [vmem:[#allocation16 + $0x20] sm:$0xf]
        %v2516 = vld [vmem:[#allocation16 + $0x24] sm:$0xf]
        %v2517 = vld [vmem:[#allocation16 + $0x28] sm:$0xf]
        %v2518 = vld [vmem:[#allocation16 + $0x2c] sm:$0xf]
        %v2519 = vld [vmem:[#allocation16 + $0x30] sm:$0xf]
        %v2520 = vld [vmem:[#allocation16 + $0x34] sm:$0xf]
        %v2521 = vld [vmem:[#allocation16 + $0x38] sm:$0xf]
        %v2522 = vld [vmem:[#allocation16 + $0x3c] sm:$0xf]
        %v2539 = vunpack.c.l.b16 %v2507
        %v2540 = vunpack.c.l.b16 %v2508
        %v2541 = vunpack.c.l.b16 %v2509
        %v2542 = vunpack.c.l.b16 %v2510
        %v2543 = vunpack.c.l.b16 %v2511
        %v2544 = vunpack.c.l.b16 %v2512
        %v2545 = vunpack.c.l.b16 %v2513
        %v2546 = vunpack.c.l.b16 %v2514
        %v2547 = vunpack.c.l.b16 %v2515
        %v2548 = vunpack.c.l.b16 %v2516
        %v2549 = vunpack.c.l.b16 %v2517
        %v2550 = vunpack.c.l.b16 %v2518
        %v2551 = vunpack.c.l.b16 %v2519
        %v2552 = vunpack.c.l.b16 %v2520
        %v2553 = vunpack.c.l.b16 %v2521
        %v2554 = vunpack.c.l.b16 %v2522
        %v2555 = vpack.c.b16 %v2540, %v2539
        %v2556 = vpack.c.b16 %v2542, %v2541
        %v2557 = vpack.c.b16 %v2544, %v2543
        %v2558 = vpack.c.b16 %v2546, %v2545
        %v2559 = vpack.c.b16 %v2548, %v2547
        %v2560 = vpack.c.b16 %v2550, %v2549
        %v2561 = vpack.c.b16 %v2552, %v2551
        %v2562 = vpack.c.b16 %v2554, %v2553
        %2571 = vmatpush.bf16.msra.mxu0 %v2562
        %2572 = vmatpush.bf16.msra.mxu0 %v2561
        %2573 = vmatpush.bf16.msra.mxu0 %v2560
        %2574 = vmatpush.bf16.msra.mxu0 %v2559
        %2575 = vmatpush.bf16.msra.mxu0 %v2558
        %2576 = vmatpush.bf16.msra.mxu0 %v2557
        %2577 = vmatpush.bf16.msra.mxu0 %v2556
        %2578 = vmatpush.bf16.msra.mxu0 %v2555
        %2579 = vmatmul.bf16.gmra.mxu0 %v2499
        %v2580 = vpop.f32.mrf.mxu0
        %v2581 = vadd.f32 0.0, %v2580
        %v2582 = vpop.f32.mrf.mxu0
        %v2583 = vadd.f32 0.0, %v2582
        %2584 = vmatmul.bf16.gmra.mxu0 %v2500
        %v2585 = vpop.f32.mrf.mxu0
        %v2586 = vadd.f32 0.0, %v2585
        %v2587 = vpop.f32.mrf.mxu0
        %v2588 = vadd.f32 0.0, %v2587
        %2589 = vmatmul.bf16.gmra.mxu0 %v2501
        %v2590 = vpop.f32.mrf.mxu0
        %v2591 = vadd.f32 0.0, %v2590
        %v2592 = vpop.f32.mrf.mxu0
        %v2593 = vadd.f32 0.0, %v2592
        %2594 = vmatmul.bf16.gmra.mxu0 %v2502
        %v2595 = vpop.f32.mrf.mxu0
        %v2596 = vadd.f32 0.0, %v2595
        %v2597 = vpop.f32.mrf.mxu0
        %v2598 = vadd.f32 0.0, %v2597
        %2599 = vmatmul.bf16.gmra.mxu0 %v2503
        %v2600 = vpop.f32.mrf.mxu0
        %v2601 = vadd.f32 0.0, %v2600
        %v2602 = vpop.f32.mrf.mxu0
        %v2603 = vadd.f32 0.0, %v2602
        %2604 = vmatmul.bf16.gmra.mxu0 %v2504
        %v2605 = vpop.f32.mrf.mxu0
        %v2606 = vadd.f32 0.0, %v2605
        %v2607 = vpop.f32.mrf.mxu0
        %v2608 = vadd.f32 0.0, %v2607
        %2609 = vmatmul.bf16.gmra.mxu0 %v2505
        %v2610 = vpop.f32.mrf.mxu0
        %v2611 = vadd.f32 0.0, %v2610
        %v2612 = vpop.f32.mrf.mxu0
        %v2613 = vadd.f32 0.0, %v2612
        %2614 = vmatmul.bf16.gmra.mxu0 %v2506
        %v2615 = vpop.f32.mrf.mxu0
        %v2616 = vadd.f32 0.0, %v2615
        %v2617 = vpop.f32.mrf.mxu0
        %v2618 = vadd.f32 0.0, %v2617
        %2619 = vdwg.mxu0
        %v2620 = vmul.f32 %v2581, %v2581
        %v2621 = vmul.f32 %v2583, %v2583
        %v2622 = vmul.f32 %v2586, %v2586
        %v2623 = vmul.f32 %v2588, %v2588
        %v2624 = vmul.f32 %v2591, %v2591
        %v2625 = vmul.f32 %v2593, %v2593
        %v2626 = vmul.f32 %v2596, %v2596
        %v2627 = vmul.f32 %v2598, %v2598
        %v2628 = vmul.f32 %v2601, %v2601
        %v2629 = vmul.f32 %v2603, %v2603
        %v2630 = vmul.f32 %v2606, %v2606
        %v2631 = vmul.f32 %v2608, %v2608
        %v2632 = vmul.f32 %v2611, %v2611
        %v2633 = vmul.f32 %v2613, %v2613
        %v2634 = vmul.f32 %v2616, %v2616
        %v2635 = vmul.f32 %v2618, %v2618
        %2636 = vadd.xlane.f32.xlu0 %v2620
        %v2637 = vpop.xlane.xlu0 %2636
        %2638 = vadd.xlane.f32.xlu0 %v2621
        %v2639 = vpop.xlane.xlu0 %2638
        %2640 = vadd.xlane.f32.xlu0 %v2622
        %v2641 = vpop.xlane.xlu0 %2640
        %2642 = vadd.xlane.f32.xlu0 %v2623
        %v2643 = vpop.xlane.xlu0 %2642
        %2644 = vadd.xlane.f32.xlu0 %v2624
        %v2645 = vpop.xlane.xlu0 %2644
        %2646 = vadd.xlane.f32.xlu0 %v2625
        %v2647 = vpop.xlane.xlu0 %2646
        %2648 = vadd.xlane.f32.xlu0 %v2626
        %v2649 = vpop.xlane.xlu0 %2648
        %2650 = vadd.xlane.f32.xlu0 %v2627
        %v2651 = vpop.xlane.xlu0 %2650
        %2652 = vadd.xlane.f32.xlu0 %v2628
        %v2653 = vpop.xlane.xlu0 %2652
        %2654 = vadd.xlane.f32.xlu0 %v2629
        %v2655 = vpop.xlane.xlu0 %2654
        %2656 = vadd.xlane.f32.xlu0 %v2630
        %v2657 = vpop.xlane.xlu0 %2656
        %2658 = vadd.xlane.f32.xlu0 %v2631
        %v2659 = vpop.xlane.xlu0 %2658
        %2660 = vadd.xlane.f32.xlu0 %v2632
        %v2661 = vpop.xlane.xlu0 %2660
        %2662 = vadd.xlane.f32.xlu0 %v2633
        %v2663 = vpop.xlane.xlu0 %2662
        %2664 = vadd.xlane.f32.xlu0 %v2634
        %v2665 = vpop.xlane.xlu0 %2664
        %2666 = vadd.xlane.f32.xlu0 %v2635
        %v2667 = vpop.xlane.xlu0 %2666
        %v2668 = vmax.f32 %v2637, 1e-24
        %v2669 = vmax.f32 %v2639, 1e-24
        %v2670 = vmax.f32 %v2641, 1e-24
        %v2671 = vmax.f32 %v2643, 1e-24
        %v2672 = vmax.f32 %v2645, 1e-24
        %v2673 = vmax.f32 %v2647, 1e-24
        %v2674 = vmax.f32 %v2649, 1e-24
        %v2675 = vmax.f32 %v2651, 1e-24
        %v2676 = vmax.f32 %v2653, 1e-24
        %v2677 = vmax.f32 %v2655, 1e-24
        %v2678 = vmax.f32 %v2657, 1e-24
        %v2679 = vmax.f32 %v2659, 1e-24
        %v2680 = vmax.f32 %v2661, 1e-24
        %v2681 = vmax.f32 %v2663, 1e-24
        %v2682 = vmax.f32 %v2665, 1e-24
        %v2683 = vmax.f32 %v2667, 1e-24
        %v2684 = vrsqrt.pop %v2668
        %v2685 = vmul.f32 %v2684, %v2668
        %v2686 = vmul.f32 %v2685, %v2684
        %v2687 = vmul.f32 0.5, %v2686
        %v2688 = vsub.f32 1.5, %v2687
        %v2689 = vmul.f32 %v2684, %v2688
        %vm2690 = vweird.f32 %v2668
        %vm2691 = vweird.f32 %v2684
        %vm2692 = vmor %vm2690, %vm2691
        %v2693 = vsel %vm2692, %v2684, %v2689
        %v2694 = vrsqrt.pop %v2669
        %v2695 = vmul.f32 %v2694, %v2669
        %v2696 = vmul.f32 %v2695, %v2694
        %v2697 = vmul.f32 0.5, %v2696
        %v2698 = vsub.f32 1.5, %v2697
        %v2699 = vmul.f32 %v2694, %v2698
        %vm2700 = vweird.f32 %v2669
        %vm2701 = vweird.f32 %v2694
        %vm2702 = vmor %vm2700, %vm2701
        %v2703 = vsel %vm2702, %v2694, %v2699
        %v2704 = vrsqrt.pop %v2670
        %v2705 = vmul.f32 %v2704, %v2670
        %v2706 = vmul.f32 %v2705, %v2704
        %v2707 = vmul.f32 0.5, %v2706
        %v2708 = vsub.f32 1.5, %v2707
        %v2709 = vmul.f32 %v2704, %v2708
        %vm2710 = vweird.f32 %v2670
        %vm2711 = vweird.f32 %v2704
        %vm2712 = vmor %vm2710, %vm2711
        %v2713 = vsel %vm2712, %v2704, %v2709
        %v2714 = vrsqrt.pop %v2671
        %v2715 = vmul.f32 %v2714, %v2671
        %v2716 = vmul.f32 %v2715, %v2714
        %v2717 = vmul.f32 0.5, %v2716
        %v2718 = vsub.f32 1.5, %v2717
        %v2719 = vmul.f32 %v2714, %v2718
        %vm2720 = vweird.f32 %v2671
        %vm2721 = vweird.f32 %v2714
        %vm2722 = vmor %vm2720, %vm2721
        %v2723 = vsel %vm2722, %v2714, %v2719
        %v2724 = vrsqrt.pop %v2672
        %v2725 = vmul.f32 %v2724, %v2672
        %v2726 = vmul.f32 %v2725, %v2724
        %v2727 = vmul.f32 0.5, %v2726
        %v2728 = vsub.f32 1.5, %v2727
        %v2729 = vmul.f32 %v2724, %v2728
        %vm2730 = vweird.f32 %v2672
        %vm2731 = vweird.f32 %v2724
        %vm2732 = vmor %vm2730, %vm2731
        %v2733 = vsel %vm2732, %v2724, %v2729
        %v2734 = vrsqrt.pop %v2673
        %v2735 = vmul.f32 %v2734, %v2673
        %v2736 = vmul.f32 %v2735, %v2734
        %v2737 = vmul.f32 0.5, %v2736
        %v2738 = vsub.f32 1.5, %v2737
        %v2739 = vmul.f32 %v2734, %v2738
        %vm2740 = vweird.f32 %v2673
        %vm2741 = vweird.f32 %v2734
        %vm2742 = vmor %vm2740, %vm2741
        %v2743 = vsel %vm2742, %v2734, %v2739
        %v2744 = vrsqrt.pop %v2674
        %v2745 = vmul.f32 %v2744, %v2674
        %v2746 = vmul.f32 %v2745, %v2744
        %v2747 = vmul.f32 0.5, %v2746
        %v2748 = vsub.f32 1.5, %v2747
        %v2749 = vmul.f32 %v2744, %v2748
        %vm2750 = vweird.f32 %v2674
        %vm2751 = vweird.f32 %v2744
        %vm2752 = vmor %vm2750, %vm2751
        %v2753 = vsel %vm2752, %v2744, %v2749
        %v2754 = vrsqrt.pop %v2675
        %v2755 = vmul.f32 %v2754, %v2675
        %v2756 = vmul.f32 %v2755, %v2754
        %v2757 = vmul.f32 0.5, %v2756
        %v2758 = vsub.f32 1.5, %v2757
        %v2759 = vmul.f32 %v2754, %v2758
        %vm2760 = vweird.f32 %v2675
        %vm2761 = vweird.f32 %v2754
        %vm2762 = vmor %vm2760, %vm2761
        %v2763 = vsel %vm2762, %v2754, %v2759
        %v2764 = vrsqrt.pop %v2676
        %v2765 = vmul.f32 %v2764, %v2676
        %v2766 = vmul.f32 %v2765, %v2764
        %v2767 = vmul.f32 0.5, %v2766
        %v2768 = vsub.f32 1.5, %v2767
        %v2769 = vmul.f32 %v2764, %v2768
        %vm2770 = vweird.f32 %v2676
        %vm2771 = vweird.f32 %v2764
        %vm2772 = vmor %vm2770, %vm2771
        %v2773 = vsel %vm2772, %v2764, %v2769
        %v2774 = vrsqrt.pop %v2677
        %v2775 = vmul.f32 %v2774, %v2677
        %v2776 = vmul.f32 %v2775, %v2774
        %v2777 = vmul.f32 0.5, %v2776
        %v2778 = vsub.f32 1.5, %v2777
        %v2779 = vmul.f32 %v2774, %v2778
        %vm2780 = vweird.f32 %v2677
        %vm2781 = vweird.f32 %v2774
        %vm2782 = vmor %vm2780, %vm2781
        %v2783 = vsel %vm2782, %v2774, %v2779
        %v2784 = vrsqrt.pop %v2678
        %v2785 = vmul.f32 %v2784, %v2678
        %v2786 = vmul.f32 %v2785, %v2784
        %v2787 = vmul.f32 0.5, %v2786
        %v2788 = vsub.f32 1.5, %v2787
        %v2789 = vmul.f32 %v2784, %v2788
        %vm2790 = vweird.f32 %v2678
        %vm2791 = vweird.f32 %v2784
        %vm2792 = vmor %vm2790, %vm2791
        %v2793 = vsel %vm2792, %v2784, %v2789
        %v2794 = vrsqrt.pop %v2679
        %v2795 = vmul.f32 %v2794, %v2679
        %v2796 = vmul.f32 %v2795, %v2794
        %v2797 = vmul.f32 0.5, %v2796
        %v2798 = vsub.f32 1.5, %v2797
        %v2799 = vmul.f32 %v2794, %v2798
        %vm2800 = vweird.f32 %v2679
        %vm2801 = vweird.f32 %v2794
        %vm2802 = vmor %vm2800, %vm2801
        %v2803 = vsel %vm2802, %v2794, %v2799
        %v2804 = vrsqrt.pop %v2680
        %v2805 = vmul.f32 %v2804, %v2680
        %v2806 = vmul.f32 %v2805, %v2804
        %v2807 = vmul.f32 0.5, %v2806
        %v2808 = vsub.f32 1.5, %v2807
        %v2809 = vmul.f32 %v2804, %v2808
        %vm2810 = vweird.f32 %v2680
        %vm2811 = vweird.f32 %v2804
        %vm2812 = vmor %vm2810, %vm2811
        %v2813 = vsel %vm2812, %v2804, %v2809
        %v2814 = vrsqrt.pop %v2681
        %v2815 = vmul.f32 %v2814, %v2681
        %v2816 = vmul.f32 %v2815, %v2814
        %v2817 = vmul.f32 0.5, %v2816
        %v2818 = vsub.f32 1.5, %v2817
        %v2819 = vmul.f32 %v2814, %v2818
        %vm2820 = vweird.f32 %v2681
        %vm2821 = vweird.f32 %v2814
        %vm2822 = vmor %vm2820, %vm2821
        %v2823 = vsel %vm2822, %v2814, %v2819
        %v2824 = vrsqrt.pop %v2682
        %v2825 = vmul.f32 %v2824, %v2682
        %v2826 = vmul.f32 %v2825, %v2824
        %v2827 = vmul.f32 0.5, %v2826
        %v2828 = vsub.f32 1.5, %v2827
        %v2829 = vmul.f32 %v2824, %v2828
        %vm2830 = vweird.f32 %v2682
        %vm2831 = vweird.f32 %v2824
        %vm2832 = vmor %vm2830, %vm2831
        %v2833 = vsel %vm2832, %v2824, %v2829
        %v2834 = vrsqrt.pop %v2683
        %v2835 = vmul.f32 %v2834, %v2683
        %v2836 = vmul.f32 %v2835, %v2834
        %v2837 = vmul.f32 0.5, %v2836
        %v2838 = vsub.f32 1.5, %v2837
        %v2839 = vmul.f32 %v2834, %v2838
        %vm2840 = vweird.f32 %v2683
        %vm2841 = vweird.f32 %v2834
        %vm2842 = vmor %vm2840, %vm2841
        %v2843 = vsel %vm2842, %v2834, %v2839
        %v2844 = vmul.f32 %v2581, %v2693
        %v2845 = vmul.f32 %v2583, %v2703
        %v2846 = vmul.f32 %v2586, %v2713
        %v2847 = vmul.f32 %v2588, %v2723
        %v2848 = vmul.f32 %v2591, %v2733
        %v2849 = vmul.f32 %v2593, %v2743
        %v2850 = vmul.f32 %v2596, %v2753
        %v2851 = vmul.f32 %v2598, %v2763
        %v2852 = vmul.f32 %v2601, %v2773
        %v2853 = vmul.f32 %v2603, %v2783
        %v2854 = vmul.f32 %v2606, %v2793
        %v2855 = vmul.f32 %v2608, %v2803
        %v2856 = vmul.f32 %v2611, %v2813
        %v2857 = vmul.f32 %v2613, %v2823
        %v2858 = vmul.f32 %v2616, %v2833
        %v2859 = vmul.f32 %v2618, %v2843
        %v2860 = vpack.c.bf16 %v2845, %v2844
        %v2861 = vpack.c.bf16 %v2847, %v2846
        %v2862 = vpack.c.bf16 %v2849, %v2848
        %v2863 = vpack.c.bf16 %v2851, %v2850
        %v2864 = vpack.c.bf16 %v2853, %v2852
        %v2865 = vpack.c.bf16 %v2855, %v2854
        %v2866 = vpack.c.bf16 %v2857, %v2856
        %v2867 = vpack.c.bf16 %v2859, %v2858
        %v2868 = vld [vmem:[#allocation2] sm:$0xf]
        %v2869 = vld [vmem:[#allocation2 + $0x4] sm:$0xf]
        %v2870 = vld [vmem:[#allocation2 + $0x8] sm:$0xf]
        %v2871 = vld [vmem:[#allocation2 + $0xc] sm:$0xf]
        %v2872 = vld [vmem:[#allocation2 + $0x10] sm:$0xf]
        %v2873 = vld [vmem:[#allocation2 + $0x14] sm:$0xf]
        %v2874 = vld [vmem:[#allocation2 + $0x18] sm:$0xf]
        %v2875 = vld [vmem:[#allocation2 + $0x1c] sm:$0xf]
        %v2876 = vld [vmem:[#allocation2 + $0x20] sm:$0xf]
        %v2877 = vld [vmem:[#allocation2 + $0x24] sm:$0xf]
        %v2878 = vld [vmem:[#allocation2 + $0x28] sm:$0xf]
        %v2879 = vld [vmem:[#allocation2 + $0x2c] sm:$0xf]
        %v2880 = vld [vmem:[#allocation2 + $0x30] sm:$0xf]
        %v2881 = vld [vmem:[#allocation2 + $0x34] sm:$0xf]
        %v2882 = vld [vmem:[#allocation2 + $0x38] sm:$0xf]
        %v2883 = vld [vmem:[#allocation2 + $0x3c] sm:$0xf]
        %v2900 = vunpack.c.l.b16 %v2868
        %v2901 = vunpack.c.l.b16 %v2869
        %v2902 = vunpack.c.l.b16 %v2870
        %v2903 = vunpack.c.l.b16 %v2871
        %v2904 = vunpack.c.l.b16 %v2872
        %v2905 = vunpack.c.l.b16 %v2873
        %v2906 = vunpack.c.l.b16 %v2874
        %v2907 = vunpack.c.l.b16 %v2875
        %v2908 = vunpack.c.l.b16 %v2876
        %v2909 = vunpack.c.l.b16 %v2877
        %v2910 = vunpack.c.l.b16 %v2878
        %v2911 = vunpack.c.l.b16 %v2879
        %v2912 = vunpack.c.l.b16 %v2880
        %v2913 = vunpack.c.l.b16 %v2881
        %v2914 = vunpack.c.l.b16 %v2882
        %v2915 = vunpack.c.l.b16 %v2883
        %v2916 = vpack.c.b16 %v2901, %v2900
        %v2917 = vpack.c.b16 %v2903, %v2902
        %v2918 = vpack.c.b16 %v2905, %v2904
        %v2919 = vpack.c.b16 %v2907, %v2906
        %v2920 = vpack.c.b16 %v2909, %v2908
        %v2921 = vpack.c.b16 %v2911, %v2910
        %v2922 = vpack.c.b16 %v2913, %v2912
        %v2923 = vpack.c.b16 %v2915, %v2914
        %2932 = vmatpush.bf16.xpose.msra.mxu0 %v2867
        %2933 = vmatpush.bf16.xpose.msra.mxu0 %v2866
        %2934 = vmatpush.bf16.xpose.msra.mxu0 %v2865
        %2935 = vmatpush.bf16.xpose.msra.mxu0 %v2864
        %2936 = vmatpush.bf16.xpose.msra.mxu0 %v2863
        %2937 = vmatpush.bf16.xpose.msra.mxu0 %v2862
        %2938 = vmatpush.bf16.xpose.msra.mxu0 %v2861
        %2939 = vmatpush.bf16.xpose.msra.mxu0 %v2860
        %2940 = vmatmul.bf16.gmra.mxu0 %v2916
        %v2941 = vpop.f32.mrf.mxu0
        %v2942 = vadd.f32 0.0, %v2941
        %v2943 = vpop.f32.mrf.mxu0
        %v2944 = vadd.f32 0.0, %v2943
        %2945 = vmatmul.bf16.gmra.mxu0 %v2917
        %v2946 = vpop.f32.mrf.mxu0
        %v2947 = vadd.f32 0.0, %v2946
        %v2948 = vpop.f32.mrf.mxu0
        %v2949 = vadd.f32 0.0, %v2948
        %2950 = vmatmul.bf16.gmra.mxu0 %v2918
        %v2951 = vpop.f32.mrf.mxu0
        %v2952 = vadd.f32 0.0, %v2951
        %v2953 = vpop.f32.mrf.mxu0
        %v2954 = vadd.f32 0.0, %v2953
        %2955 = vmatmul.bf16.gmra.mxu0 %v2919
        %v2956 = vpop.f32.mrf.mxu0
        %v2957 = vadd.f32 0.0, %v2956
        %v2958 = vpop.f32.mrf.mxu0
        %v2959 = vadd.f32 0.0, %v2958
        %2960 = vmatmul.bf16.gmra.mxu0 %v2920
        %v2961 = vpop.f32.mrf.mxu0
        %v2962 = vadd.f32 0.0, %v2961
        %v2963 = vpop.f32.mrf.mxu0
        %v2964 = vadd.f32 0.0, %v2963
        %2965 = vmatmul.bf16.gmra.mxu0 %v2921
        %v2966 = vpop.f32.mrf.mxu0
        %v2967 = vadd.f32 0.0, %v2966
        %v2968 = vpop.f32.mrf.mxu0
        %v2969 = vadd.f32 0.0, %v2968
        %2970 = vmatmul.bf16.gmra.mxu0 %v2922
        %v2971 = vpop.f32.mrf.mxu0
        %v2972 = vadd.f32 0.0, %v2971
        %v2973 = vpop.f32.mrf.mxu0
        %v2974 = vadd.f32 0.0, %v2973
        %2975 = vmatmul.bf16.gmra.mxu0 %v2923
        %v2976 = vpop.f32.mrf.mxu0
        %v2977 = vadd.f32 0.0, %v2976
        %v2978 = vpop.f32.mrf.mxu0
        %v2979 = vadd.f32 0.0, %v2978
        %2980 = vdwg.mxu0
        %v2981 = vstv %s482
        %v2982 = vmul.f32 %v2942, %v2981
        %v2983 = vmul.f32 %v2944, %v2981
        %v2984 = vmul.f32 %v2947, %v2981
        %v2985 = vmul.f32 %v2949, %v2981
        %v2986 = vmul.f32 %v2952, %v2981
        %v2987 = vmul.f32 %v2954, %v2981
        %v2988 = vmul.f32 %v2957, %v2981
        %v2989 = vmul.f32 %v2959, %v2981
        %v2990 = vmul.f32 %v2962, %v2981
        %v2991 = vmul.f32 %v2964, %v2981
        %v2992 = vmul.f32 %v2967, %v2981
        %v2993 = vmul.f32 %v2969, %v2981
        %v2994 = vmul.f32 %v2972, %v2981
        %v2995 = vmul.f32 %v2974, %v2981
        %v2996 = vmul.f32 %v2977, %v2981
        %v2997 = vmul.f32 %v2979, %v2981
        %v2998 = vstv %s483
        %v2999 = vadd.f32 %v2982, %v2998
        %v3000 = vadd.f32 %v2983, %v2998
        %v3001 = vadd.f32 %v2984, %v2998
        %v3002 = vadd.f32 %v2985, %v2998
        %v3003 = vadd.f32 %v2986, %v2998
        %v3004 = vadd.f32 %v2987, %v2998
        %v3005 = vadd.f32 %v2988, %v2998
        %v3006 = vadd.f32 %v2989, %v2998
        %v3007 = vadd.f32 %v2990, %v2998
        %v3008 = vadd.f32 %v2991, %v2998
        %v3009 = vadd.f32 %v2992, %v2998
        %v3010 = vadd.f32 %v2993, %v2998
        %v3011 = vadd.f32 %v2994, %v2998
        %v3012 = vadd.f32 %v2995, %v2998
        %v3013 = vadd.f32 %v2996, %v2998
        %v3014 = vadd.f32 %v2997, %v2998
        %3015 = vst [vmem:[%s478] sm:$0xff] %v2999
        %3016 = vst [vmem:[%s478 + $0x8] sm:$0xff] %v3000
        %3017 = vst [vmem:[%s478 + $0x10] sm:$0xff] %v3001
        %3018 = vst [vmem:[%s478 + $0x18] sm:$0xff] %v3002
        %3019 = vst [vmem:[%s478 + $0x20] sm:$0xff] %v3003
        %3020 = vst [vmem:[%s478 + $0x28] sm:$0xff] %v3004
        %3021 = vst [vmem:[%s478 + $0x30] sm:$0xff] %v3005
        %3022 = vst [vmem:[%s478 + $0x38] sm:$0xff] %v3006
        %3023 = vst [vmem:[%s478 + $0x40] sm:$0xff] %v3007
        %3024 = vst [vmem:[%s478 + $0x48] sm:$0xff] %v3008
        %3025 = vst [vmem:[%s478 + $0x50] sm:$0xff] %v3009
        %3026 = vst [vmem:[%s478 + $0x58] sm:$0xff] %v3010
        %3027 = vst [vmem:[%s478 + $0x60] sm:$0xff] %v3011
        %3028 = vst [vmem:[%s478 + $0x68] sm:$0xff] %v3012
        %3029 = vst [vmem:[%s478 + $0x70] sm:$0xff] %v3013
        %3030 = vst [vmem:[%s478 + $0x78] sm:$0xff] %v3014
        %s3031 = sand.u32 %s231, 1
        %s3032 = scalar_lea.sflag [#allocation5], %s3031
        %s3033 = sand.u32 %s231, 1
        %s3034 = smul.addr %s3033, 128
        %s3035 = scalar_lea.vmem [#allocation17], %s3034
        // Predicated region
        $region89: #{tpu_custom_call.1} parent=51 // pred_check
          %p3036 = pneg %p241
        $region90: #{tpu_custom_call.1} parent=51 // pred_check_branch
          %3038 = sbr.rel (%p3036) target = $region92
        $region91: #{tpu_custom_call.1} parent=51 // pred_region
          %s3039 = smul.u32 16, %s35
          %3041 = vsyncadd %s3032, 0
          %s3042 = smul.addr %s3039, 2
          %s3043 = sadd.s32 %s36, %s3042
          %s3044 = smul.addr %s3043, 8
          %s3045 = scalar_lea.hbm %s8, %s3044
          %s3046 = sshll.u32 %s3035, 4
          %s3047 = int_to_ptr.vmem [resolvable:$true] %s3046
          %s3048 = sshll.u32 %s3045, 4
          %s3049 = int_to_ptr.hbm [resolvable:$true] %s3048
          %3054 = dma.vmem_to_hbm [thread:$0]  %s3047, 2048, %s3049, %s3032, 128, 256, 8
        $region92: #{tpu_custom_call.1} parent=51 // pred_fallthru
          _
      $region52: #{tpu_custom_call.1} parent=5 // pred_fallthru
        _
      %p3055 = scmp.le.s32.totalorder 2, %s26
      // Predicated region
      $region93: #{tpu_custom_call.1} parent=5 // pred_check
        %p3056 = pneg %p3055
      $region94: #{tpu_custom_call.1} parent=5 // pred_check_branch
        %3058 = sbr.rel (%p3056) target = $region96
      $region95: #{tpu_custom_call.1} parent=5 // pred_region
        %s3059 = ssub.s32 %s26, 2
        // Predicated region
        $region97: #{tpu_custom_call.1} parent=95 // pred_check
          %p3060 = pneg %p247
        $region98: #{tpu_custom_call.1} parent=95 // pred_check_branch
          %3062 = sbr.rel (%p3060) target = $region100
        $region99: #{tpu_custom_call.1} parent=95 // pred_region
          %s3063 = sand.u32 %s232, 1
          %s3064 = scalar_lea.sflag [#allocation5], %s3063
          %s3065 = sand.u32 %s232, 1
          %s3066 = smul.addr %s3065, 128
          %s3067 = scalar_lea.vmem [#allocation17], %s3066
          %3069 = dma.done %s3064, 2048
        $region100: #{tpu_custom_call.1} parent=95 // pred_fallthru
          _
      $region96: #{tpu_custom_call.1} parent=5 // pred_fallthru
        _
    $region6: #{tpu_custom_call.1} parent=1 // loop_footer
      %s30 = sadd.s32 1, %s26
    $region7: #{tpu_custom_call.1} parent=1 // loop_footer_branch
      %25 = sbr.rel target = $region3
    $region8: #{tpu_custom_call.1} parent=1 // loop_exit
      _
    %3070 = vsyncpa [#allocation4], 1
    %s3071 = scalar_lea.sflag [#allocation4], 1
    %3072 = vsyncpa %s3071, 1
    %3073 = vsyncpa [#allocation9], 1
    %s3074 = scalar_lea.sflag [#allocation9], 1
    %3075 = vsyncpa %s3074, 1
    %3076 = vsyncpa [#allocation12], 1
    %3077 = vsyncpa [#allocation15], 1
    %3078 = vsyncpa [#allocation5], 1
    %s3079 = scalar_lea.sflag [#allocation5], 1
    %3080 = vsyncpa %s3079, 1
    %3081 = vsyncpa [#allocation6], 1
    %s3082 = scalar_lea.sflag [#allocation6], 1
    %3083 = vsyncpa %s3082, 1

</llo_original>
